<compile_context>
chip_gen: v7x
topology: tpu7x:2x2x1
jax: 0.10.0
libtpu: 0.0.40
codegen_flags: <defaults>
</compile_context>

<pallas_src>
import jax
import jax.numpy as jnp
from jax.experimental import pallas as pl
from jax.experimental.pallas import tpu as pltpu


def _fused_kernel(x_ref, w_ref, gb_ref, o_ref):
    # x_ref:  [C_in, M]        (M = N*H*W; channels-major activations)
    # w_ref:  [C_out_blk, C_in]
    # gb_ref: [C_out_blk, 2]   (col 0 = BN gamma, col 1 = BN beta)
    # o_ref:  [C_out_blk, M]

    # relu65
    x = jnp.maximum(x_ref[...], 0.0)

    # conv2d65: 1x1 conv, stride 1, no bias == matmul on the MXU.
    # bf16 MXU inputs (cuts v5e f32-emulation passes), f32 accumulation.
    y = jnp.dot(
        w_ref[...].astype(jnp.bfloat16),
        x.astype(jnp.bfloat16),
        preferred_element_type=jnp.float32,
    )  # [C_out_blk, M], already NCHW-ordered

    # batchnorm2d66 (training mode: biased batch statistics over N*H*W).
    # Single-pass f32 stats: one sweep for sum and sum-of-squares.
    # Stats are per-channel, so a C_out split is numerically identical;
    # the M axis must NEVER be tiled without a grid-carried accumulator.
    m = jnp.float32(y.shape[1])
    s = jnp.sum(y, axis=1, keepdims=True)           # [C_out_blk, 1]
    ss = jnp.sum(y * y, axis=1, keepdims=True)      # [C_out_blk, 1]
    mean = s / m
    var = jnp.maximum(ss / m - mean * mean, 0.0)    # guard tiny negative fp error
    inv_std = jax.lax.rsqrt(var + 1e-5)

    # Fold BN into one per-channel scale/shift (2 full-tile VPU passes).
    gb = gb_ref[...]
    scale = gb[:, 0:1] * inv_std                    # gamma / sqrt(var+eps)
    shift = gb[:, 1:2] - mean * scale               # beta - mean*scale
    # TODO(synk): running_mean / running_var momentum updates are module state
    # side-effects and do not affect the forward output; they are not emitted.

    # relu66
    o_ref[...] = jnp.maximum(y * scale + shift, 0.0)


def _num_cout_blocks(c_out):
    """How many C_out blocks to grid over.

    v7x has 2 TensorCores per chip: a parallel C_out split lets the Pallas
    grid shard across both.  On single-TC v5e/v6e the per-step grid overhead
    roughly cancels the DMA-overlap gain at this size, so stay gridless.
    """
    try:
        kind = (jax.devices()[0].device_kind or "").lower()
    except Exception:
        kind = ""
    if "v7" in kind:
        blocks = 2
        if c_out % blocks == 0 and (c_out // blocks) % 8 == 0:
            return blocks
    return 1


def fused_relu_conv1x1_bn_relu(x_nchw, weight_oihw, gamma, beta):
    """x_nchw: [N, C_in, H, W], weight_oihw: [C_out, C_in, 1, 1] -> [N, C_out, H, W]."""
    N, C_in, H, W = x_nchw.shape
    C_out = weight_oihw.shape[0]
    M = N * H * W

    # Channels-major 2-D views. For N=1 (the module's case) this is a pure
    # reshape -- no transpose op, no extra HBM traffic.
    if N == 1:
        x2d = x_nchw.reshape(C_in, M)
    else:
        # General-N fallback (not hit by the spec module): one transpose to
        # keep the C_in contraction contiguous.
        x2d = jnp.transpose(x_nchw, (1, 0, 2, 3)).reshape(C_in, M)

    w2d = weight_oihw.reshape(C_out, C_in)            # no .T needed in this layout
    gb2d = jnp.stack([gamma, beta], axis=1).astype(jnp.float32)  # [C_out, 2]

    flops = 2 * M * C_in * C_out
    bytes_accessed = 4 * (C_in * M + C_out * C_in + C_out * M + 2 * C_out)
    cost = pl.CostEstimate(
        flops=flops, transcendentals=0, bytes_accessed=bytes_accessed
    )

    n_blocks = _num_cout_blocks(C_out)

    if n_blocks > 1:
        # v7x path: parallel grid over C_out so both TensorCores split the
        # work.  Block shapes are (8,128)-legal: 96 % 8 == 0; last dims
        # (C_in=1008, M=196, 2) equal the full array dims.
        blk = C_out // n_blocks
        out2d = pl.pallas_call(
            _fused_kernel,
            out_shape=jax.ShapeDtypeStruct((C_out, M), jnp.float32),
            grid=(n_blocks,),
            in_specs=[
                pl.BlockSpec((C_in, M), lambda i: (0, 0)),    # x: fetched once per core
                pl.BlockSpec((blk, C_in), lambda i: (i, 0)),  # w rows for this block
                pl.BlockSpec((blk, 2), lambda i: (i, 0)),     # gamma/beta rows
            ],
            out_specs=pl.BlockSpec((blk, M), lambda i: (i, 0)),
            compiler_params=pltpu.CompilerParams(
                dimension_semantics=("parallel",)
            ),
            cost_estimate=cost,
        )(x2d, w2d, gb2d)
    else:
        # v5e / v6e path: everything fits comfortably in VMEM (~1.7 MiB), so a
        # single full-array block (no grid) avoids per-step grid overhead.
        out2d = pl.pallas_call(
            _fused_kernel,
            out_shape=jax.ShapeDtypeStruct((C_out, M), jnp.float32),
            in_specs=[
                pl.BlockSpec(memory_space=pltpu.MemorySpace.VMEM),
                pl.BlockSpec(memory_space=pltpu.MemorySpace.VMEM),
                pl.BlockSpec(memory_space=pltpu.MemorySpace.VMEM),
            ],
            out_specs=pl.BlockSpec(memory_space=pltpu.MemorySpace.VMEM),
            cost_estimate=cost,
        )(x2d, w2d, gb2d)

    # [C_out, M] is already channel-major: reshape back to NCHW.
    if N == 1:
        return out2d.reshape(N, C_out, H, W)
    return jnp.transpose(out2d.reshape(C_out, N, H, W), (1, 0, 2, 3))


if __name__ == "__main__":
    key = jax.random.PRNGKey(0)
    k_x, k_w = jax.random.split(key)

    # Shapes implied by the module: N=1, C_in=1008, C_out=192, 14x14 spatial.
    N, C_in, H, W = 1, 1008, 14, 14
    C_out = 192

    x = jax.random.normal(k_x, (N, C_in, H, W), dtype=jnp.float32)

    # Deterministic parameter init (PyTorch-like kaiming-uniform scale).
    fan_in = C_in  # 1x1 kernel
    bound = (1.0 / fan_in) ** 0.5
    weight = jax.random.uniform(
        k_w, (C_out, C_in, 1, 1), dtype=jnp.float32, minval=-bound, maxval=bound
    )
    gamma = jnp.ones((C_out,), dtype=jnp.float32)   # BN affine weight
    beta = jnp.zeros((C_out,), dtype=jnp.float32)   # BN affine bias

    out = fused_relu_conv1x1_bn_relu(x, weight, gamma, beta)
    out = jax.block_until_ready(out)
    assert out.shape == (N, C_out, H, W)

    # Reference 1: matching MXU precision (bf16 inputs, f32 accumulation) --
    # validates the fused ReLU/conv/BN/ReLU logic at tight tolerance.
    x2d = jnp.maximum(x, 0.0).reshape(C_in, H * W)
    w2d = weight.reshape(C_out, C_in)
    y_bf = jnp.dot(
        w2d.astype(jnp.bfloat16), x2d.astype(jnp.bfloat16),
        preferred_element_type=jnp.float32,
    )
    mean_bf = jnp.mean(y_bf, axis=1, keepdims=True)
    var_bf = jnp.mean((y_bf - mean_bf) ** 2, axis=1, keepdims=True)
    ref_bf = jnp.maximum(
        (y_bf - mean_bf) / jnp.sqrt(var_bf + 1e-5) * gamma[:, None] + beta[:, None],
        0.0,
    ).reshape(N, C_out, H, W)
    assert jnp.allclose(out, ref_bf, atol=1e-3, rtol=1e-3)

    # Reference 2: full-f32 semantics of the original module (looser tolerance
    # accounts for the bf16 MXU inputs).
    y32 = w2d @ x2d
    mean32 = jnp.mean(y32, axis=1, keepdims=True)
    var32 = jnp.mean((y32 - mean32) ** 2, axis=1, keepdims=True)
    ref32 = jnp.maximum(
        (y32 - mean32) / jnp.sqrt(var32 + 1e-5) * gamma[:, None] + beta[:, None],
        0.0,
    ).reshape(N, C_out, H, W)
    assert jnp.allclose(out, ref32, atol=5e-2, rtol=5e-2)

    print("KERNEL_OK")
</pallas_src>

<mosaic_0001>
module attributes {stable_mosaic.version = 11 : i64} {
  func.func @_fused_kernel(%arg0: memref<1008x196xf32, #tpu.memory_space<vmem>>, %arg1: memref<192x1008xf32, #tpu.memory_space<vmem>>, %arg2: memref<192x2xf32, #tpu.memory_space<vmem>>, %arg3: memref<192x196xf32, #tpu.memory_space<vmem>>) attributes {dimension_semantics = [], scalar_prefetch = 0 : i64, scratch_operands = 0 : i64, tpu.core_type = #tpu.core_type<tc>} {
    %c0 = arith.constant 0 : index
    %c0_0 = arith.constant 0 : index
    %0 = vector.load %arg0[%c0, %c0_0] : memref<1008x196xf32, #tpu.memory_space<vmem>>, vector<1008x196xf32>
    %cst = arith.constant 0.000000e+00 : f32
    %1 = vector.broadcast %cst : f32 to vector<1008x196xf32>
    %2 = arith.maximumf %0, %1 : vector<1008x196xf32>
    %c0_1 = arith.constant 0 : index
    %c0_2 = arith.constant 0 : index
    %3 = vector.load %arg1[%c0_1, %c0_2] : memref<192x1008xf32, #tpu.memory_space<vmem>>, vector<192x1008xf32>
    %4 = arith.truncf %3 : vector<192x1008xf32> to vector<192x1008xbf16>
    %5 = arith.truncf %2 : vector<1008x196xf32> to vector<1008x196xbf16>
    %cst_3 = arith.constant dense<0.000000e+00> : vector<192x196xf32>
    %6 = tpu.matmul %4, %5, %cst_3 {dimension_numbers = #tpu.dot_dimension_numbers<[1], [0], [0], [1], [0, 0, 1, 1], [], []>} : vector<192x1008xbf16>, vector<1008x196xbf16>, vector<192x196xf32> -> vector<192x196xf32>
    %cst_4 = arith.constant dense<0.000000e+00> : vector<192xf32>
    %7 = vector.multi_reduction <add>, %6, %cst_4 [1] : vector<192x196xf32> to vector<192xf32>
    %8 = vector.shape_cast %7 : vector<192xf32> to vector<192x1xf32>
    %9 = arith.mulf %6, %6 : vector<192x196xf32>
    %cst_5 = arith.constant dense<0.000000e+00> : vector<192xf32>
    %10 = vector.multi_reduction <add>, %9, %cst_5 [1] : vector<192x196xf32> to vector<192xf32>
    %11 = vector.shape_cast %10 : vector<192xf32> to vector<192x1xf32>
    %cst_6 = arith.constant 1.960000e+02 : f32
    %12 = vector.broadcast %cst_6 : f32 to vector<192x1xf32>
    %13 = arith.divf %8, %12 : vector<192x1xf32>
    %cst_7 = arith.constant 1.960000e+02 : f32
    %14 = vector.broadcast %cst_7 : f32 to vector<192x1xf32>
    %15 = arith.divf %11, %14 : vector<192x1xf32>
    %16 = arith.mulf %13, %13 : vector<192x1xf32>
    %17 = arith.subf %15, %16 : vector<192x1xf32>
    %cst_8 = arith.constant 0.000000e+00 : f32
    %18 = vector.broadcast %cst_8 : f32 to vector<192x1xf32>
    %19 = arith.maximumf %17, %18 : vector<192x1xf32>
    %cst_9 = arith.constant 9.99999974E-6 : f32
    %20 = vector.broadcast %cst_9 : f32 to vector<192x1xf32>
    %21 = arith.addf %19, %20 : vector<192x1xf32>
    %22 = math.rsqrt %21 : vector<192x1xf32>
    %c0_10 = arith.constant 0 : index
    %c0_11 = arith.constant 0 : index
    %23 = vector.load %arg2[%c0_10, %c0_11] : memref<192x2xf32, #tpu.memory_space<vmem>>, vector<192x2xf32>
    %24 = vector.extract_strided_slice %23 {offsets = [0, 0], sizes = [192, 1], strides = [1, 1]} : vector<192x2xf32> to vector<192x1xf32>
    %25 = arith.mulf %24, %22 : vector<192x1xf32>
    %26 = vector.extract_strided_slice %23 {offsets = [0, 1], sizes = [192, 1], strides = [1, 1]} : vector<192x2xf32> to vector<192x1xf32>
    %27 = arith.mulf %13, %25 : vector<192x1xf32>
    %28 = arith.subf %26, %27 : vector<192x1xf32>
    %29 = vector.broadcast %25 : vector<192x1xf32> to vector<192x196xf32>
    %30 = arith.mulf %6, %29 : vector<192x196xf32>
    %31 = vector.broadcast %28 : vector<192x1xf32> to vector<192x196xf32>
    %32 = arith.addf %30, %31 : vector<192x196xf32>
    %cst_12 = arith.constant 0.000000e+00 : f32
    %33 = vector.broadcast %cst_12 : f32 to vector<192x196xf32>
    %34 = arith.maximumf %32, %33 : vector<192x196xf32>
    %c0_13 = arith.constant 0 : index
    %c0_14 = arith.constant 0 : index
    %35 = vector.load %arg3[%c0_13, %c0_14] : memref<192x196xf32, #tpu.memory_space<vmem>>, vector<192x196xf32>
    tpu.vector_store %arg3[%c0_13, %c0_14], %34 {strides = array<i32>} : memref<192x196xf32, #tpu.memory_space<vmem>>, vector<192x196xf32>,
    return
  }
}

</mosaic_0001>

<llo_original>
// kernel: tpu_custom_call.1
$region0: #{tpu_custom_call.1}
  #allocation0 [shape = 'u32[]', space=smem, size = 0x4, offset = 0x4, fixed_abs, tag = 'smem constant byte address 0x4 - core index']
  #allocation1 [shape = 'u32[144,128]{1,0:T(1,128)}', space=vmem, size = 0x12000, scoped, tag = 'internal scratch']
  %s0 = inlined_call_operand.vmem [shape: f32[1008,196], index: 0, kind: input, shape index: {}]
  %s1 = inlined_call_operand.vmem [shape: f32[192,1008], index: 1, kind: input, shape index: {}]
  %s2 = inlined_call_operand.vmem [shape: f32[192,2], index: 2, kind: input, shape index: {}]
  %s3 = inlined_call_operand.hbm [shape: f32[192,196], index: 3, kind: output, shape index: {}]
  %s4 = sld [smem:[#allocation0]]
  $region22: #{tpu_custom_call.1} parent=0
    _
  %s6 = ssub.s32 1, %s4
  %s7 = scalar_select 0, %s6, %s4
  $region1: #{tpu_custom_call.1} parent=0
    #allocation2 [shape = 'u8[196608]{0}', space=vmem, size = 0x30000, scoped, tag = 'output window, operand 0, single buffered']
    #allocation3 [shape = 's32[1]{0}', space=sflag, size = 0x4, scoped, tag = 'scoped memory for tpu_custom_call.1']
    %8 = vsyncpa [#allocation3], 0
    // Predicated region
    $region2: #{tpu_custom_call.1} parent=1 // pred_check
      _
    $region3: #{tpu_custom_call.1} parent=1 // pred_check_branch
      %10 = sbr.rel (0) target = $region5
    $region4: #{tpu_custom_call.1} parent=1 // pred_region
      _
    $region5: #{tpu_custom_call.1} parent=1 // pred_fallthru
      _
    // Predicated region
    $region6: #{tpu_custom_call.1} parent=1 // pred_check
      _
    $region7: #{tpu_custom_call.1} parent=1 // pred_check_branch
      %12 = sbr.rel (0) target = $region9
    $region8: #{tpu_custom_call.1} parent=1 // pred_region
      _
    $region9: #{tpu_custom_call.1} parent=1 // pred_fallthru
      _
    // Predicated region
    $region10: #{tpu_custom_call.1} parent=1 // pred_check
      _
    $region11: #{tpu_custom_call.1} parent=1 // pred_check_branch
      %14 = sbr.rel (0) target = $region13
    $region12: #{tpu_custom_call.1} parent=1 // pred_region
      _
    $region13: #{tpu_custom_call.1} parent=1 // pred_fallthru
      _
    %v16 = vld [vmem:[%s0] sm:$0xff]
    %v17 = vld [vmem:[%s0 + $0x8] sm:$0xff]
    %v18 = vld [vmem:[%s0 + $0x10] sm:$0xff]
    %v19 = vld [vmem:[%s0 + $0x18] sm:$0xff]
    %v20 = vld [vmem:[%s0 + $0x20] sm:$0xff]
    %v21 = vld [vmem:[%s0 + $0x28] sm:$0xff]
    %v22 = vld [vmem:[%s0 + $0x30] sm:$0xff]
    %v23 = vld [vmem:[%s0 + $0x38] sm:$0xff]
    %v24 = vld [vmem:[%s0 + $0x40] sm:$0xff]
    %v25 = vld [vmem:[%s0 + $0x48] sm:$0xff]
    %v26 = vld [vmem:[%s0 + $0x50] sm:$0xff]
    %v27 = vld [vmem:[%s0 + $0x58] sm:$0xff]
    %v28 = vld [vmem:[%s0 + $0x60] sm:$0xff]
    %v29 = vld [vmem:[%s0 + $0x68] sm:$0xff]
    %v30 = vld [vmem:[%s0 + $0x70] sm:$0xff]
    %v31 = vld [vmem:[%s0 + $0x78] sm:$0xff]
    %v32 = vld [vmem:[%s0 + $0x80] sm:$0xff]
    %v33 = vld [vmem:[%s0 + $0x88] sm:$0xff]
    %v34 = vld [vmem:[%s0 + $0x90] sm:$0xff]
    %v35 = vld [vmem:[%s0 + $0x98] sm:$0xff]
    %v36 = vld [vmem:[%s0 + $0xa0] sm:$0xff]
    %v37 = vld [vmem:[%s0 + $0xa8] sm:$0xff]
    %v38 = vld [vmem:[%s0 + $0xb0] sm:$0xff]
    %v39 = vld [vmem:[%s0 + $0xb8] sm:$0xff]
    %v40 = vld [vmem:[%s0 + $0xc0] sm:$0xff]
    %v41 = vld [vmem:[%s0 + $0xc8] sm:$0xff]
    %v42 = vld [vmem:[%s0 + $0xd0] sm:$0xff]
    %v43 = vld [vmem:[%s0 + $0xd8] sm:$0xff]
    %v44 = vld [vmem:[%s0 + $0xe0] sm:$0xff]
    %v45 = vld [vmem:[%s0 + $0xe8] sm:$0xff]
    %v46 = vld [vmem:[%s0 + $0xf0] sm:$0xff]
    %v47 = vld [vmem:[%s0 + $0xf8] sm:$0xff]
    %v48 = vld [vmem:[%s0 + $0x100] sm:$0xff]
    %v49 = vld [vmem:[%s0 + $0x108] sm:$0xff]
    %v50 = vld [vmem:[%s0 + $0x110] sm:$0xff]
    %v51 = vld [vmem:[%s0 + $0x118] sm:$0xff]
    %v52 = vld [vmem:[%s0 + $0x120] sm:$0xff]
    %v53 = vld [vmem:[%s0 + $0x128] sm:$0xff]
    %v54 = vld [vmem:[%s0 + $0x130] sm:$0xff]
    %v55 = vld [vmem:[%s0 + $0x138] sm:$0xff]
    %v56 = vld [vmem:[%s0 + $0x140] sm:$0xff]
    %v57 = vld [vmem:[%s0 + $0x148] sm:$0xff]
    %v58 = vld [vmem:[%s0 + $0x150] sm:$0xff]
    %v59 = vld [vmem:[%s0 + $0x158] sm:$0xff]
    %v60 = vld [vmem:[%s0 + $0x160] sm:$0xff]
    %v61 = vld [vmem:[%s0 + $0x168] sm:$0xff]
    %v62 = vld [vmem:[%s0 + $0x170] sm:$0xff]
    %v63 = vld [vmem:[%s0 + $0x178] sm:$0xff]
    %v64 = vld [vmem:[%s0 + $0x180] sm:$0xff]
    %v65 = vld [vmem:[%s0 + $0x188] sm:$0xff]
    %v66 = vld [vmem:[%s0 + $0x190] sm:$0xff]
    %v67 = vld [vmem:[%s0 + $0x198] sm:$0xff]
    %v68 = vld [vmem:[%s0 + $0x1a0] sm:$0xff]
    %v69 = vld [vmem:[%s0 + $0x1a8] sm:$0xff]
    %v70 = vld [vmem:[%s0 + $0x1b0] sm:$0xff]
    %v71 = vld [vmem:[%s0 + $0x1b8] sm:$0xff]
    %v72 = vld [vmem:[%s0 + $0x1c0] sm:$0xff]
    %v73 = vld [vmem:[%s0 + $0x1c8] sm:$0xff]
    %v74 = vld [vmem:[%s0 + $0x1d0] sm:$0xff]
    %v75 = vld [vmem:[%s0 + $0x1d8] sm:$0xff]
    %v76 = vld [vmem:[%s0 + $0x1e0] sm:$0xff]
    %v77 = vld [vmem:[%s0 + $0x1e8] sm:$0xff]
    %v78 = vld [vmem:[%s0 + $0x1f0] sm:$0xff]
    %v79 = vld [vmem:[%s0 + $0x1f8] sm:$0xff]
    %v80 = vld [vmem:[%s0 + $0x200] sm:$0xff]
    %v81 = vld [vmem:[%s0 + $0x208] sm:$0xff]
    %v82 = vld [vmem:[%s0 + $0x210] sm:$0xff]
    %v83 = vld [vmem:[%s0 + $0x218] sm:$0xff]
    %v84 = vld [vmem:[%s0 + $0x220] sm:$0xff]
    %v85 = vld [vmem:[%s0 + $0x228] sm:$0xff]
    %v86 = vld [vmem:[%s0 + $0x230] sm:$0xff]
    %v87 = vld [vmem:[%s0 + $0x238] sm:$0xff]
    %v88 = vld [vmem:[%s0 + $0x240] sm:$0xff]
    %v89 = vld [vmem:[%s0 + $0x248] sm:$0xff]
    %v90 = vld [vmem:[%s0 + $0x250] sm:$0xff]
    %v91 = vld [vmem:[%s0 + $0x258] sm:$0xff]
    %v92 = vld [vmem:[%s0 + $0x260] sm:$0xff]
    %v93 = vld [vmem:[%s0 + $0x268] sm:$0xff]
    %v94 = vld [vmem:[%s0 + $0x270] sm:$0xff]
    %v95 = vld [vmem:[%s0 + $0x278] sm:$0xff]
    %v96 = vld [vmem:[%s0 + $0x280] sm:$0xff]
    %v97 = vld [vmem:[%s0 + $0x288] sm:$0xff]
    %v98 = vld [vmem:[%s0 + $0x290] sm:$0xff]
    %v99 = vld [vmem:[%s0 + $0x298] sm:$0xff]
    %v100 = vld [vmem:[%s0 + $0x2a0] sm:$0xff]
    %v101 = vld [vmem:[%s0 + $0x2a8] sm:$0xff]
    %v102 = vld [vmem:[%s0 + $0x2b0] sm:$0xff]
    %v103 = vld [vmem:[%s0 + $0x2b8] sm:$0xff]
    %v104 = vld [vmem:[%s0 + $0x2c0] sm:$0xff]
    %v105 = vld [vmem:[%s0 + $0x2c8] sm:$0xff]
    %v106 = vld [vmem:[%s0 + $0x2d0] sm:$0xff]
    %v107 = vld [vmem:[%s0 + $0x2d8] sm:$0xff]
    %v108 = vld [vmem:[%s0 + $0x2e0] sm:$0xff]
    %v109 = vld [vmem:[%s0 + $0x2e8] sm:$0xff]
    %v110 = vld [vmem:[%s0 + $0x2f0] sm:$0xff]
    %v111 = vld [vmem:[%s0 + $0x2f8] sm:$0xff]
    %v112 = vld [vmem:[%s0 + $0x300] sm:$0xff]
    %v113 = vld [vmem:[%s0 + $0x308] sm:$0xff]
    %v114 = vld [vmem:[%s0 + $0x310] sm:$0xff]
    %v115 = vld [vmem:[%s0 + $0x318] sm:$0xff]
    %v116 = vld [vmem:[%s0 + $0x320] sm:$0xff]
    %v117 = vld [vmem:[%s0 + $0x328] sm:$0xff]
    %v118 = vld [vmem:[%s0 + $0x330] sm:$0xff]
    %v119 = vld [vmem:[%s0 + $0x338] sm:$0xff]
    %v120 = vld [vmem:[%s0 + $0x340] sm:$0xff]
    %v121 = vld [vmem:[%s0 + $0x348] sm:$0xff]
    %v122 = vld [vmem:[%s0 + $0x350] sm:$0xff]
    %v123 = vld [vmem:[%s0 + $0x358] sm:$0xff]
    %v124 = vld [vmem:[%s0 + $0x360] sm:$0xff]
    %v125 = vld [vmem:[%s0 + $0x368] sm:$0xff]
    %v126 = vld [vmem:[%s0 + $0x370] sm:$0xff]
    %v127 = vld [vmem:[%s0 + $0x378] sm:$0xff]
    %v128 = vld [vmem:[%s0 + $0x380] sm:$0xff]
    %v129 = vld [vmem:[%s0 + $0x388] sm:$0xff]
    %v130 = vld [vmem:[%s0 + $0x390] sm:$0xff]
    %v131 = vld [vmem:[%s0 + $0x398] sm:$0xff]
    %v132 = vld [vmem:[%s0 + $0x3a0] sm:$0xff]
    %v133 = vld [vmem:[%s0 + $0x3a8] sm:$0xff]
    %v134 = vld [vmem:[%s0 + $0x3b0] sm:$0xff]
    %v135 = vld [vmem:[%s0 + $0x3b8] sm:$0xff]
    %v136 = vld [vmem:[%s0 + $0x3c0] sm:$0xff]
    %v137 = vld [vmem:[%s0 + $0x3c8] sm:$0xff]
    %v138 = vld [vmem:[%s0 + $0x3d0] sm:$0xff]
    %v139 = vld [vmem:[%s0 + $0x3d8] sm:$0xff]
    %v140 = vld [vmem:[%s0 + $0x3e0] sm:$0xff]
    %v141 = vld [vmem:[%s0 + $0x3e8] sm:$0xff]
    %v142 = vld [vmem:[%s0 + $0x3f0] sm:$0xff]
    %v143 = vld [vmem:[%s0 + $0x3f8] sm:$0xff]
    %v144 = vld [vmem:[%s0 + $0x400] sm:$0xff]
    %v145 = vld [vmem:[%s0 + $0x408] sm:$0xff]
    %v146 = vld [vmem:[%s0 + $0x410] sm:$0xff]
    %v147 = vld [vmem:[%s0 + $0x418] sm:$0xff]
    %v148 = vld [vmem:[%s0 + $0x420] sm:$0xff]
    %v149 = vld [vmem:[%s0 + $0x428] sm:$0xff]
    %v150 = vld [vmem:[%s0 + $0x430] sm:$0xff]
    %v151 = vld [vmem:[%s0 + $0x438] sm:$0xff]
    %v152 = vld [vmem:[%s0 + $0x440] sm:$0xff]
    %v153 = vld [vmem:[%s0 + $0x448] sm:$0xff]
    %v154 = vld [vmem:[%s0 + $0x450] sm:$0xff]
    %v155 = vld [vmem:[%s0 + $0x458] sm:$0xff]
    %v156 = vld [vmem:[%s0 + $0x460] sm:$0xff]
    %v157 = vld [vmem:[%s0 + $0x468] sm:$0xff]
    %v158 = vld [vmem:[%s0 + $0x470] sm:$0xff]
    %v159 = vld [vmem:[%s0 + $0x478] sm:$0xff]
    %v160 = vld [vmem:[%s0 + $0x480] sm:$0xff]
    %v161 = vld [vmem:[%s0 + $0x488] sm:$0xff]
    %v162 = vld [vmem:[%s0 + $0x490] sm:$0xff]
    %v163 = vld [vmem:[%s0 + $0x498] sm:$0xff]
    %v164 = vld [vmem:[%s0 + $0x4a0] sm:$0xff]
    %v165 = vld [vmem:[%s0 + $0x4a8] sm:$0xff]
    %v166 = vld [vmem:[%s0 + $0x4b0] sm:$0xff]
    %v167 = vld [vmem:[%s0 + $0x4b8] sm:$0xff]
    %v168 = vld [vmem:[%s0 + $0x4c0] sm:$0xff]
    %v169 = vld [vmem:[%s0 + $0x4c8] sm:$0xff]
    %v170 = vld [vmem:[%s0 + $0x4d0] sm:$0xff]
    %v171 = vld [vmem:[%s0 + $0x4d8] sm:$0xff]
    %v172 = vld [vmem:[%s0 + $0x4e0] sm:$0xff]
    %v173 = vld [vmem:[%s0 + $0x4e8] sm:$0xff]
    %v174 = vld [vmem:[%s0 + $0x4f0] sm:$0xff]
    %v175 = vld [vmem:[%s0 + $0x4f8] sm:$0xff]
    %v176 = vld [vmem:[%s0 + $0x500] sm:$0xff]
    %v177 = vld [vmem:[%s0 + $0x508] sm:$0xff]
    %v178 = vld [vmem:[%s0 + $0x510] sm:$0xff]
    %v179 = vld [vmem:[%s0 + $0x518] sm:$0xff]
    %v180 = vld [vmem:[%s0 + $0x520] sm:$0xff]
    %v181 = vld [vmem:[%s0 + $0x528] sm:$0xff]
    %v182 = vld [vmem:[%s0 + $0x530] sm:$0xff]
    %v183 = vld [vmem:[%s0 + $0x538] sm:$0xff]
    %v184 = vld [vmem:[%s0 + $0x540] sm:$0xff]
    %v185 = vld [vmem:[%s0 + $0x548] sm:$0xff]
    %v186 = vld [vmem:[%s0 + $0x550] sm:$0xff]
    %v187 = vld [vmem:[%s0 + $0x558] sm:$0xff]
    %v188 = vld [vmem:[%s0 + $0x560] sm:$0xff]
    %v189 = vld [vmem:[%s0 + $0x568] sm:$0xff]
    %v190 = vld [vmem:[%s0 + $0x570] sm:$0xff]
    %v191 = vld [vmem:[%s0 + $0x578] sm:$0xff]
    %v192 = vld [vmem:[%s0 + $0x580] sm:$0xff]
    %v193 = vld [vmem:[%s0 + $0x588] sm:$0xff]
    %v194 = vld [vmem:[%s0 + $0x590] sm:$0xff]
    %v195 = vld [vmem:[%s0 + $0x598] sm:$0xff]
    %v196 = vld [vmem:[%s0 + $0x5a0] sm:$0xff]
    %v197 = vld [vmem:[%s0 + $0x5a8] sm:$0xff]
    %v198 = vld [vmem:[%s0 + $0x5b0] sm:$0xff]
    %v199 = vld [vmem:[%s0 + $0x5b8] sm:$0xff]
    %v200 = vld [vmem:[%s0 + $0x5c0] sm:$0xff]
    %v201 = vld [vmem:[%s0 + $0x5c8] sm:$0xff]
    %v202 = vld [vmem:[%s0 + $0x5d0] sm:$0xff]
    %v203 = vld [vmem:[%s0 + $0x5d8] sm:$0xff]
    %v204 = vld [vmem:[%s0 + $0x5e0] sm:$0xff]
    %v205 = vld [vmem:[%s0 + $0x5e8] sm:$0xff]
    %v206 = vld [vmem:[%s0 + $0x5f0] sm:$0xff]
    %v207 = vld [vmem:[%s0 + $0x5f8] sm:$0xff]
    %v208 = vld [vmem:[%s0 + $0x600] sm:$0xff]
    %v209 = vld [vmem:[%s0 + $0x608] sm:$0xff]
    %v210 = vld [vmem:[%s0 + $0x610] sm:$0xff]
    %v211 = vld [vmem:[%s0 + $0x618] sm:$0xff]
    %v212 = vld [vmem:[%s0 + $0x620] sm:$0xff]
    %v213 = vld [vmem:[%s0 + $0x628] sm:$0xff]
    %v214 = vld [vmem:[%s0 + $0x630] sm:$0xff]
    %v215 = vld [vmem:[%s0 + $0x638] sm:$0xff]
    %v216 = vld [vmem:[%s0 + $0x640] sm:$0xff]
    %v217 = vld [vmem:[%s0 + $0x648] sm:$0xff]
    %v218 = vld [vmem:[%s0 + $0x650] sm:$0xff]
    %v219 = vld [vmem:[%s0 + $0x658] sm:$0xff]
    %v220 = vld [vmem:[%s0 + $0x660] sm:$0xff]
    %v221 = vld [vmem:[%s0 + $0x668] sm:$0xff]
    %v222 = vld [vmem:[%s0 + $0x670] sm:$0xff]
    %v223 = vld [vmem:[%s0 + $0x678] sm:$0xff]
    %v224 = vld [vmem:[%s0 + $0x680] sm:$0xff]
    %v225 = vld [vmem:[%s0 + $0x688] sm:$0xff]
    %v226 = vld [vmem:[%s0 + $0x690] sm:$0xff]
    %v227 = vld [vmem:[%s0 + $0x698] sm:$0xff]
    %v228 = vld [vmem:[%s0 + $0x6a0] sm:$0xff]
    %v229 = vld [vmem:[%s0 + $0x6a8] sm:$0xff]
    %v230 = vld [vmem:[%s0 + $0x6b0] sm:$0xff]
    %v231 = vld [vmem:[%s0 + $0x6b8] sm:$0xff]
    %v232 = vld [vmem:[%s0 + $0x6c0] sm:$0xff]
    %v233 = vld [vmem:[%s0 + $0x6c8] sm:$0xff]
    %v234 = vld [vmem:[%s0 + $0x6d0] sm:$0xff]
    %v235 = vld [vmem:[%s0 + $0x6d8] sm:$0xff]
    %v236 = vld [vmem:[%s0 + $0x6e0] sm:$0xff]
    %v237 = vld [vmem:[%s0 + $0x6e8] sm:$0xff]
    %v238 = vld [vmem:[%s0 + $0x6f0] sm:$0xff]
    %v239 = vld [vmem:[%s0 + $0x6f8] sm:$0xff]
    %v240 = vld [vmem:[%s0 + $0x700] sm:$0xff]
    %v241 = vld [vmem:[%s0 + $0x708] sm:$0xff]
    %v242 = vld [vmem:[%s0 + $0x710] sm:$0xff]
    %v243 = vld [vmem:[%s0 + $0x718] sm:$0xff]
    %v244 = vld [vmem:[%s0 + $0x720] sm:$0xff]
    %v245 = vld [vmem:[%s0 + $0x728] sm:$0xff]
    %v246 = vld [vmem:[%s0 + $0x730] sm:$0xff]
    %v247 = vld [vmem:[%s0 + $0x738] sm:$0xff]
    %v248 = vld [vmem:[%s0 + $0x740] sm:$0xff]
    %v249 = vld [vmem:[%s0 + $0x748] sm:$0xff]
    %v250 = vld [vmem:[%s0 + $0x750] sm:$0xff]
    %v251 = vld [vmem:[%s0 + $0x758] sm:$0xff]
    %v252 = vld [vmem:[%s0 + $0x760] sm:$0xff]
    %v253 = vld [vmem:[%s0 + $0x768] sm:$0xff]
    %v254 = vld [vmem:[%s0 + $0x770] sm:$0xff]
    %v255 = vld [vmem:[%s0 + $0x778] sm:$0xff]
    %v256 = vld [vmem:[%s0 + $0x780] sm:$0xff]
    %v257 = vld [vmem:[%s0 + $0x788] sm:$0xff]
    %v258 = vld [vmem:[%s0 + $0x790] sm:$0xff]
    %v259 = vld [vmem:[%s0 + $0x798] sm:$0xff]
    %v260 = vld [vmem:[%s0 + $0x7a0] sm:$0xff]
    %v261 = vld [vmem:[%s0 + $0x7a8] sm:$0xff]
    %v262 = vld [vmem:[%s0 + $0x7b0] sm:$0xff]
    %v263 = vld [vmem:[%s0 + $0x7b8] sm:$0xff]
    %v264 = vld [vmem:[%s0 + $0x7c0] sm:$0xff]
    %v265 = vld [vmem:[%s0 + $0x7c8] sm:$0xff]
    %v266 = vld [vmem:[%s0 + $0x7d0] sm:$0xff]
    %v267 = vld [vmem:[%s0 + $0x7d8] sm:$0xff]
    %v268 = vmax.f32 %v16, 0.0
    %v269 = vmax.f32 %v17, 0.0
    %v270 = vmax.f32 %v18, 0.0
    %v271 = vmax.f32 %v19, 0.0
    %v272 = vmax.f32 %v20, 0.0
    %v273 = vmax.f32 %v21, 0.0
    %v274 = vmax.f32 %v22, 0.0
    %v275 = vmax.f32 %v23, 0.0
    %v276 = vmax.f32 %v24, 0.0
    %v277 = vmax.f32 %v25, 0.0
    %v278 = vmax.f32 %v26, 0.0
    %v279 = vmax.f32 %v27, 0.0
    %v280 = vmax.f32 %v28, 0.0
    %v281 = vmax.f32 %v29, 0.0
    %v282 = vmax.f32 %v30, 0.0
    %v283 = vmax.f32 %v31, 0.0
    %v284 = vmax.f32 %v32, 0.0
    %v285 = vmax.f32 %v33, 0.0
    %v286 = vmax.f32 %v34, 0.0
    %v287 = vmax.f32 %v35, 0.0
    %v288 = vmax.f32 %v36, 0.0
    %v289 = vmax.f32 %v37, 0.0
    %v290 = vmax.f32 %v38, 0.0
    %v291 = vmax.f32 %v39, 0.0
    %v292 = vmax.f32 %v40, 0.0
    %v293 = vmax.f32 %v41, 0.0
    %v294 = vmax.f32 %v42, 0.0
    %v295 = vmax.f32 %v43, 0.0
    %v296 = vmax.f32 %v44, 0.0
    %v297 = vmax.f32 %v45, 0.0
    %v298 = vmax.f32 %v46, 0.0
    %v299 = vmax.f32 %v47, 0.0
    %v300 = vmax.f32 %v48, 0.0
    %v301 = vmax.f32 %v49, 0.0
    %v302 = vmax.f32 %v50, 0.0
    %v303 = vmax.f32 %v51, 0.0
    %v304 = vmax.f32 %v52, 0.0
    %v305 = vmax.f32 %v53, 0.0
    %v306 = vmax.f32 %v54, 0.0
    %v307 = vmax.f32 %v55, 0.0
    %v308 = vmax.f32 %v56, 0.0
    %v309 = vmax.f32 %v57, 0.0
    %v310 = vmax.f32 %v58, 0.0
    %v311 = vmax.f32 %v59, 0.0
    %v312 = vmax.f32 %v60, 0.0
    %v313 = vmax.f32 %v61, 0.0
    %v314 = vmax.f32 %v62, 0.0
    %v315 = vmax.f32 %v63, 0.0
    %v316 = vmax.f32 %v64, 0.0
    %v317 = vmax.f32 %v65, 0.0
    %v318 = vmax.f32 %v66, 0.0
    %v319 = vmax.f32 %v67, 0.0
    %v320 = vmax.f32 %v68, 0.0
    %v321 = vmax.f32 %v69, 0.0
    %v322 = vmax.f32 %v70, 0.0
    %v323 = vmax.f32 %v71, 0.0
    %v324 = vmax.f32 %v72, 0.0
    %v325 = vmax.f32 %v73, 0.0
    %v326 = vmax.f32 %v74, 0.0
    %v327 = vmax.f32 %v75, 0.0
    %v328 = vmax.f32 %v76, 0.0
    %v329 = vmax.f32 %v77, 0.0
    %v330 = vmax.f32 %v78, 0.0
    %v331 = vmax.f32 %v79, 0.0
    %v332 = vmax.f32 %v80, 0.0
    %v333 = vmax.f32 %v81, 0.0
    %v334 = vmax.f32 %v82, 0.0
    %v335 = vmax.f32 %v83, 0.0
    %v336 = vmax.f32 %v84, 0.0
    %v337 = vmax.f32 %v85, 0.0
    %v338 = vmax.f32 %v86, 0.0
    %v339 = vmax.f32 %v87, 0.0
    %v340 = vmax.f32 %v88, 0.0
    %v341 = vmax.f32 %v89, 0.0
    %v342 = vmax.f32 %v90, 0.0
    %v343 = vmax.f32 %v91, 0.0
    %v344 = vmax.f32 %v92, 0.0
    %v345 = vmax.f32 %v93, 0.0
    %v346 = vmax.f32 %v94, 0.0
    %v347 = vmax.f32 %v95, 0.0
    %v348 = vmax.f32 %v96, 0.0
    %v349 = vmax.f32 %v97, 0.0
    %v350 = vmax.f32 %v98, 0.0
    %v351 = vmax.f32 %v99, 0.0
    %v352 = vmax.f32 %v100, 0.0
    %v353 = vmax.f32 %v101, 0.0
    %v354 = vmax.f32 %v102, 0.0
    %v355 = vmax.f32 %v103, 0.0
    %v356 = vmax.f32 %v104, 0.0
    %v357 = vmax.f32 %v105, 0.0
    %v358 = vmax.f32 %v106, 0.0
    %v359 = vmax.f32 %v107, 0.0
    %v360 = vmax.f32 %v108, 0.0
    %v361 = vmax.f32 %v109, 0.0
    %v362 = vmax.f32 %v110, 0.0
    %v363 = vmax.f32 %v111, 0.0
    %v364 = vmax.f32 %v112, 0.0
    %v365 = vmax.f32 %v113, 0.0
    %v366 = vmax.f32 %v114, 0.0
    %v367 = vmax.f32 %v115, 0.0
    %v368 = vmax.f32 %v116, 0.0
    %v369 = vmax.f32 %v117, 0.0
    %v370 = vmax.f32 %v118, 0.0
    %v371 = vmax.f32 %v119, 0.0
    %v372 = vmax.f32 %v120, 0.0
    %v373 = vmax.f32 %v121, 0.0
    %v374 = vmax.f32 %v122, 0.0
    %v375 = vmax.f32 %v123, 0.0
    %v376 = vmax.f32 %v124, 0.0
    %v377 = vmax.f32 %v125, 0.0
    %v378 = vmax.f32 %v126, 0.0
    %v379 = vmax.f32 %v127, 0.0
    %v380 = vmax.f32 %v128, 0.0
    %v381 = vmax.f32 %v129, 0.0
    %v382 = vmax.f32 %v130, 0.0
    %v383 = vmax.f32 %v131, 0.0
    %v384 = vmax.f32 %v132, 0.0
    %v385 = vmax.f32 %v133, 0.0
    %v386 = vmax.f32 %v134, 0.0
    %v387 = vmax.f32 %v135, 0.0
    %v388 = vmax.f32 %v136, 0.0
    %v389 = vmax.f32 %v137, 0.0
    %v390 = vmax.f32 %v138, 0.0
    %v391 = vmax.f32 %v139, 0.0
    %v392 = vmax.f32 %v140, 0.0
    %v393 = vmax.f32 %v141, 0.0
    %v394 = vmax.f32 %v142, 0.0
    %v395 = vmax.f32 %v143, 0.0
    %v396 = vmax.f32 %v144, 0.0
    %v397 = vmax.f32 %v145, 0.0
    %v398 = vmax.f32 %v146, 0.0
    %v399 = vmax.f32 %v147, 0.0
    %v400 = vmax.f32 %v148, 0.0
    %v401 = vmax.f32 %v149, 0.0
    %v402 = vmax.f32 %v150, 0.0
    %v403 = vmax.f32 %v151, 0.0
    %v404 = vmax.f32 %v152, 0.0
    %v405 = vmax.f32 %v153, 0.0
    %v406 = vmax.f32 %v154, 0.0
    %v407 = vmax.f32 %v155, 0.0
    %v408 = vmax.f32 %v156, 0.0
    %v409 = vmax.f32 %v157, 0.0
    %v410 = vmax.f32 %v158, 0.0
    %v411 = vmax.f32 %v159, 0.0
    %v412 = vmax.f32 %v160, 0.0
    %v413 = vmax.f32 %v161, 0.0
    %v414 = vmax.f32 %v162, 0.0
    %v415 = vmax.f32 %v163, 0.0
    %v416 = vmax.f32 %v164, 0.0
    %v417 = vmax.f32 %v165, 0.0
    %v418 = vmax.f32 %v166, 0.0
    %v419 = vmax.f32 %v167, 0.0
    %v420 = vmax.f32 %v168, 0.0
    %v421 = vmax.f32 %v169, 0.0
    %v422 = vmax.f32 %v170, 0.0
    %v423 = vmax.f32 %v171, 0.0
    %v424 = vmax.f32 %v172, 0.0
    %v425 = vmax.f32 %v173, 0.0
    %v426 = vmax.f32 %v174, 0.0
    %v427 = vmax.f32 %v175, 0.0
    %v428 = vmax.f32 %v176, 0.0
    %v429 = vmax.f32 %v177, 0.0
    %v430 = vmax.f32 %v178, 0.0
    %v431 = vmax.f32 %v179, 0.0
    %v432 = vmax.f32 %v180, 0.0
    %v433 = vmax.f32 %v181, 0.0
    %v434 = vmax.f32 %v182, 0.0
    %v435 = vmax.f32 %v183, 0.0
    %v436 = vmax.f32 %v184, 0.0
    %v437 = vmax.f32 %v185, 0.0
    %v438 = vmax.f32 %v186, 0.0
    %v439 = vmax.f32 %v187, 0.0
    %v440 = vmax.f32 %v188, 0.0
    %v441 = vmax.f32 %v189, 0.0
    %v442 = vmax.f32 %v190, 0.0
    %v443 = vmax.f32 %v191, 0.0
    %v444 = vmax.f32 %v192, 0.0
    %v445 = vmax.f32 %v193, 0.0
    %v446 = vmax.f32 %v194, 0.0
    %v447 = vmax.f32 %v195, 0.0
    %v448 = vmax.f32 %v196, 0.0
    %v449 = vmax.f32 %v197, 0.0
    %v450 = vmax.f32 %v198, 0.0
    %v451 = vmax.f32 %v199, 0.0
    %v452 = vmax.f32 %v200, 0.0
    %v453 = vmax.f32 %v201, 0.0
    %v454 = vmax.f32 %v202, 0.0
    %v455 = vmax.f32 %v203, 0.0
    %v456 = vmax.f32 %v204, 0.0
    %v457 = vmax.f32 %v205, 0.0
    %v458 = vmax.f32 %v206, 0.0
    %v459 = vmax.f32 %v207, 0.0
    %v460 = vmax.f32 %v208, 0.0
    %v461 = vmax.f32 %v209, 0.0
    %v462 = vmax.f32 %v210, 0.0
    %v463 = vmax.f32 %v211, 0.0
    %v464 = vmax.f32 %v212, 0.0
    %v465 = vmax.f32 %v213, 0.0
    %v466 = vmax.f32 %v214, 0.0
    %v467 = vmax.f32 %v215, 0.0
    %v468 = vmax.f32 %v216, 0.0
    %v469 = vmax.f32 %v217, 0.0
    %v470 = vmax.f32 %v218, 0.0
    %v471 = vmax.f32 %v219, 0.0
    %v472 = vmax.f32 %v220, 0.0
    %v473 = vmax.f32 %v221, 0.0
    %v474 = vmax.f32 %v222, 0.0
    %v475 = vmax.f32 %v223, 0.0
    %v476 = vmax.f32 %v224, 0.0
    %v477 = vmax.f32 %v225, 0.0
    %v478 = vmax.f32 %v226, 0.0
    %v479 = vmax.f32 %v227, 0.0
    %v480 = vmax.f32 %v228, 0.0
    %v481 = vmax.f32 %v229, 0.0
    %v482 = vmax.f32 %v230, 0.0
    %v483 = vmax.f32 %v231, 0.0
    %v484 = vmax.f32 %v232, 0.0
    %v485 = vmax.f32 %v233, 0.0
    %v486 = vmax.f32 %v234, 0.0
    %v487 = vmax.f32 %v235, 0.0
    %v488 = vmax.f32 %v236, 0.0
    %v489 = vmax.f32 %v237, 0.0
    %v490 = vmax.f32 %v238, 0.0
    %v491 = vmax.f32 %v239, 0.0
    %v492 = vmax.f32 %v240, 0.0
    %v493 = vmax.f32 %v241, 0.0
    %v494 = vmax.f32 %v242, 0.0
    %v495 = vmax.f32 %v243, 0.0
    %v496 = vmax.f32 %v244, 0.0
    %v497 = vmax.f32 %v245, 0.0
    %v498 = vmax.f32 %v246, 0.0
    %v499 = vmax.f32 %v247, 0.0
    %v500 = vmax.f32 %v248, 0.0
    %v501 = vmax.f32 %v249, 0.0
    %v502 = vmax.f32 %v250, 0.0
    %v503 = vmax.f32 %v251, 0.0
    %v504 = vmax.f32 %v252, 0.0
    %v505 = vmax.f32 %v253, 0.0
    %v506 = vmax.f32 %v254, 0.0
    %v507 = vmax.f32 %v255, 0.0
    %v508 = vmax.f32 %v256, 0.0
    %v509 = vmax.f32 %v257, 0.0
    %v510 = vmax.f32 %v258, 0.0
    %v511 = vmax.f32 %v259, 0.0
    %v512 = vmax.f32 %v260, 0.0
    %v513 = vmax.f32 %v261, 0.0
    %v514 = vmax.f32 %v262, 0.0
    %v515 = vmax.f32 %v263, 0.0
    %v516 = vmax.f32 %v264, 0.0
    %v517 = vmax.f32 %v265, 0.0
    %v518 = vmax.f32 %v266, 0.0
    %v519 = vmax.f32 %v267, 0.0
    %v520 = vld [vmem:[%s1] sm:$0xff]
    %v521 = vld [vmem:[%s1 + $0x8] sm:$0xff]
    %v522 = vld [vmem:[%s1 + $0x10] sm:$0xff]
    %v523 = vld [vmem:[%s1 + $0x18] sm:$0xff]
    %v524 = vld [vmem:[%s1 + $0x20] sm:$0xff]
    %v525 = vld [vmem:[%s1 + $0x28] sm:$0xff]
    %v526 = vld [vmem:[%s1 + $0x30] sm:$0xff]
    %v527 = vld [vmem:[%s1 + $0x38] sm:$0xff]
    %v528 = vld [vmem:[%s1 + $0x40] sm:$0xff]
    %v529 = vld [vmem:[%s1 + $0x48] sm:$0xff]
    %v530 = vld [vmem:[%s1 + $0x50] sm:$0xff]
    %v531 = vld [vmem:[%s1 + $0x58] sm:$0xff]
    %v532 = vld [vmem:[%s1 + $0x60] sm:$0xff]
    %v533 = vld [vmem:[%s1 + $0x68] sm:$0xff]
    %v534 = vld [vmem:[%s1 + $0x70] sm:$0xff]
    %v535 = vld [vmem:[%s1 + $0x78] sm:$0xff]
    %v536 = vld [vmem:[%s1 + $0x80] sm:$0xff]
    %v537 = vld [vmem:[%s1 + $0x88] sm:$0xff]
    %v538 = vld [vmem:[%s1 + $0x90] sm:$0xff]
    %v539 = vld [vmem:[%s1 + $0x98] sm:$0xff]
    %v540 = vld [vmem:[%s1 + $0xa0] sm:$0xff]
    %v541 = vld [vmem:[%s1 + $0xa8] sm:$0xff]
    %v542 = vld [vmem:[%s1 + $0xb0] sm:$0xff]
    %v543 = vld [vmem:[%s1 + $0xb8] sm:$0xff]
    %v544 = vld [vmem:[%s1 + $0xc0] sm:$0xff]
    %v545 = vld [vmem:[%s1 + $0xc8] sm:$0xff]
    %v546 = vld [vmem:[%s1 + $0xd0] sm:$0xff]
    %v547 = vld [vmem:[%s1 + $0xd8] sm:$0xff]
    %v548 = vld [vmem:[%s1 + $0xe0] sm:$0xff]
    %v549 = vld [vmem:[%s1 + $0xe8] sm:$0xff]
    %v550 = vld [vmem:[%s1 + $0xf0] sm:$0xff]
    %v551 = vld [vmem:[%s1 + $0xf8] sm:$0xff]
    %v552 = vld [vmem:[%s1 + $0x100] sm:$0xff]
    %v553 = vld [vmem:[%s1 + $0x108] sm:$0xff]
    %v554 = vld [vmem:[%s1 + $0x110] sm:$0xff]
    %v555 = vld [vmem:[%s1 + $0x118] sm:$0xff]
    %v556 = vld [vmem:[%s1 + $0x120] sm:$0xff]
    %v557 = vld [vmem:[%s1 + $0x128] sm:$0xff]
    %v558 = vld [vmem:[%s1 + $0x130] sm:$0xff]
    %v559 = vld [vmem:[%s1 + $0x138] sm:$0xff]
    %v560 = vld [vmem:[%s1 + $0x140] sm:$0xff]
    %v561 = vld [vmem:[%s1 + $0x148] sm:$0xff]
    %v562 = vld [vmem:[%s1 + $0x150] sm:$0xff]
    %v563 = vld [vmem:[%s1 + $0x158] sm:$0xff]
    %v564 = vld [vmem:[%s1 + $0x160] sm:$0xff]
    %v565 = vld [vmem:[%s1 + $0x168] sm:$0xff]
    %v566 = vld [vmem:[%s1 + $0x170] sm:$0xff]
    %v567 = vld [vmem:[%s1 + $0x178] sm:$0xff]
    %v568 = vld [vmem:[%s1 + $0x180] sm:$0xff]
    %v569 = vld [vmem:[%s1 + $0x188] sm:$0xff]
    %v570 = vld [vmem:[%s1 + $0x190] sm:$0xff]
    %v571 = vld [vmem:[%s1 + $0x198] sm:$0xff]
    %v572 = vld [vmem:[%s1 + $0x1a0] sm:$0xff]
    %v573 = vld [vmem:[%s1 + $0x1a8] sm:$0xff]
    %v574 = vld [vmem:[%s1 + $0x1b0] sm:$0xff]
    %v575 = vld [vmem:[%s1 + $0x1b8] sm:$0xff]
    %v576 = vld [vmem:[%s1 + $0x1c0] sm:$0xff]
    %v577 = vld [vmem:[%s1 + $0x1c8] sm:$0xff]
    %v578 = vld [vmem:[%s1 + $0x1d0] sm:$0xff]
    %v579 = vld [vmem:[%s1 + $0x1d8] sm:$0xff]
    %v580 = vld [vmem:[%s1 + $0x1e0] sm:$0xff]
    %v581 = vld [vmem:[%s1 + $0x1e8] sm:$0xff]
    %v582 = vld [vmem:[%s1 + $0x1f0] sm:$0xff]
    %v583 = vld [vmem:[%s1 + $0x1f8] sm:$0xff]
    %v584 = vld [vmem:[%s1 + $0x200] sm:$0xff]
    %v585 = vld [vmem:[%s1 + $0x208] sm:$0xff]
    %v586 = vld [vmem:[%s1 + $0x210] sm:$0xff]
    %v587 = vld [vmem:[%s1 + $0x218] sm:$0xff]
    %v588 = vld [vmem:[%s1 + $0x220] sm:$0xff]
    %v589 = vld [vmem:[%s1 + $0x228] sm:$0xff]
    %v590 = vld [vmem:[%s1 + $0x230] sm:$0xff]
    %v591 = vld [vmem:[%s1 + $0x238] sm:$0xff]
    %v592 = vld [vmem:[%s1 + $0x240] sm:$0xff]
    %v593 = vld [vmem:[%s1 + $0x248] sm:$0xff]
    %v594 = vld [vmem:[%s1 + $0x250] sm:$0xff]
    %v595 = vld [vmem:[%s1 + $0x258] sm:$0xff]
    %v596 = vld [vmem:[%s1 + $0x260] sm:$0xff]
    %v597 = vld [vmem:[%s1 + $0x268] sm:$0xff]
    %v598 = vld [vmem:[%s1 + $0x270] sm:$0xff]
    %v599 = vld [vmem:[%s1 + $0x278] sm:$0xff]
    %v600 = vld [vmem:[%s1 + $0x280] sm:$0xff]
    %v601 = vld [vmem:[%s1 + $0x288] sm:$0xff]
    %v602 = vld [vmem:[%s1 + $0x290] sm:$0xff]
    %v603 = vld [vmem:[%s1 + $0x298] sm:$0xff]
    %v604 = vld [vmem:[%s1 + $0x2a0] sm:$0xff]
    %v605 = vld [vmem:[%s1 + $0x2a8] sm:$0xff]
    %v606 = vld [vmem:[%s1 + $0x2b0] sm:$0xff]
    %v607 = vld [vmem:[%s1 + $0x2b8] sm:$0xff]
    %v608 = vld [vmem:[%s1 + $0x2c0] sm:$0xff]
    %v609 = vld [vmem:[%s1 + $0x2c8] sm:$0xff]
    %v610 = vld [vmem:[%s1 + $0x2d0] sm:$0xff]
    %v611 = vld [vmem:[%s1 + $0x2d8] sm:$0xff]
    %v612 = vld [vmem:[%s1 + $0x2e0] sm:$0xff]
    %v613 = vld [vmem:[%s1 + $0x2e8] sm:$0xff]
    %v614 = vld [vmem:[%s1 + $0x2f0] sm:$0xff]
    %v615 = vld [vmem:[%s1 + $0x2f8] sm:$0xff]
    %v616 = vld [vmem:[%s1 + $0x300] sm:$0xff]
    %v617 = vld [vmem:[%s1 + $0x308] sm:$0xff]
    %v618 = vld [vmem:[%s1 + $0x310] sm:$0xff]
    %v619 = vld [vmem:[%s1 + $0x318] sm:$0xff]
    %v620 = vld [vmem:[%s1 + $0x320] sm:$0xff]
    %v621 = vld [vmem:[%s1 + $0x328] sm:$0xff]
    %v622 = vld [vmem:[%s1 + $0x330] sm:$0xff]
    %v623 = vld [vmem:[%s1 + $0x338] sm:$0xff]
    %v624 = vld [vmem:[%s1 + $0x340] sm:$0xff]
    %v625 = vld [vmem:[%s1 + $0x348] sm:$0xff]
    %v626 = vld [vmem:[%s1 + $0x350] sm:$0xff]
    %v627 = vld [vmem:[%s1 + $0x358] sm:$0xff]
    %v628 = vld [vmem:[%s1 + $0x360] sm:$0xff]
    %v629 = vld [vmem:[%s1 + $0x368] sm:$0xff]
    %v630 = vld [vmem:[%s1 + $0x370] sm:$0xff]
    %v631 = vld [vmem:[%s1 + $0x378] sm:$0xff]
    %v632 = vld [vmem:[%s1 + $0x380] sm:$0xff]
    %v633 = vld [vmem:[%s1 + $0x388] sm:$0xff]
    %v634 = vld [vmem:[%s1 + $0x390] sm:$0xff]
    %v635 = vld [vmem:[%s1 + $0x398] sm:$0xff]
    %v636 = vld [vmem:[%s1 + $0x3a0] sm:$0xff]
    %v637 = vld [vmem:[%s1 + $0x3a8] sm:$0xff]
    %v638 = vld [vmem:[%s1 + $0x3b0] sm:$0xff]
    %v639 = vld [vmem:[%s1 + $0x3b8] sm:$0xff]
    %v640 = vld [vmem:[%s1 + $0x3c0] sm:$0xff]
    %v641 = vld [vmem:[%s1 + $0x3c8] sm:$0xff]
    %v642 = vld [vmem:[%s1 + $0x3d0] sm:$0xff]
    %v643 = vld [vmem:[%s1 + $0x3d8] sm:$0xff]
    %v644 = vld [vmem:[%s1 + $0x3e0] sm:$0xff]
    %v645 = vld [vmem:[%s1 + $0x3e8] sm:$0xff]
    %v646 = vld [vmem:[%s1 + $0x3f0] sm:$0xff]
    %v647 = vld [vmem:[%s1 + $0x3f8] sm:$0xff]
    %v648 = vld [vmem:[%s1 + $0x400] sm:$0xff]
    %v649 = vld [vmem:[%s1 + $0x408] sm:$0xff]
    %v650 = vld [vmem:[%s1 + $0x410] sm:$0xff]
    %v651 = vld [vmem:[%s1 + $0x418] sm:$0xff]
    %v652 = vld [vmem:[%s1 + $0x420] sm:$0xff]
    %v653 = vld [vmem:[%s1 + $0x428] sm:$0xff]
    %v654 = vld [vmem:[%s1 + $0x430] sm:$0xff]
    %v655 = vld [vmem:[%s1 + $0x438] sm:$0xff]
    %v656 = vld [vmem:[%s1 + $0x440] sm:$0xff]
    %v657 = vld [vmem:[%s1 + $0x448] sm:$0xff]
    %v658 = vld [vmem:[%s1 + $0x450] sm:$0xff]
    %v659 = vld [vmem:[%s1 + $0x458] sm:$0xff]
    %v660 = vld [vmem:[%s1 + $0x460] sm:$0xff]
    %v661 = vld [vmem:[%s1 + $0x468] sm:$0xff]
    %v662 = vld [vmem:[%s1 + $0x470] sm:$0xff]
    %v663 = vld [vmem:[%s1 + $0x478] sm:$0xff]
    %v664 = vld [vmem:[%s1 + $0x480] sm:$0xff]
    %v665 = vld [vmem:[%s1 + $0x488] sm:$0xff]
    %v666 = vld [vmem:[%s1 + $0x490] sm:$0xff]
    %v667 = vld [vmem:[%s1 + $0x498] sm:$0xff]
    %v668 = vld [vmem:[%s1 + $0x4a0] sm:$0xff]
    %v669 = vld [vmem:[%s1 + $0x4a8] sm:$0xff]
    %v670 = vld [vmem:[%s1 + $0x4b0] sm:$0xff]
    %v671 = vld [vmem:[%s1 + $0x4b8] sm:$0xff]
    %v672 = vld [vmem:[%s1 + $0x4c0] sm:$0xff]
    %v673 = vld [vmem:[%s1 + $0x4c8] sm:$0xff]
    %v674 = vld [vmem:[%s1 + $0x4d0] sm:$0xff]
    %v675 = vld [vmem:[%s1 + $0x4d8] sm:$0xff]
    %v676 = vld [vmem:[%s1 + $0x4e0] sm:$0xff]
    %v677 = vld [vmem:[%s1 + $0x4e8] sm:$0xff]
    %v678 = vld [vmem:[%s1 + $0x4f0] sm:$0xff]
    %v679 = vld [vmem:[%s1 + $0x4f8] sm:$0xff]
    %v680 = vld [vmem:[%s1 + $0x500] sm:$0xff]
    %v681 = vld [vmem:[%s1 + $0x508] sm:$0xff]
    %v682 = vld [vmem:[%s1 + $0x510] sm:$0xff]
    %v683 = vld [vmem:[%s1 + $0x518] sm:$0xff]
    %v684 = vld [vmem:[%s1 + $0x520] sm:$0xff]
    %v685 = vld [vmem:[%s1 + $0x528] sm:$0xff]
    %v686 = vld [vmem:[%s1 + $0x530] sm:$0xff]
    %v687 = vld [vmem:[%s1 + $0x538] sm:$0xff]
    %v688 = vld [vmem:[%s1 + $0x540] sm:$0xff]
    %v689 = vld [vmem:[%s1 + $0x548] sm:$0xff]
    %v690 = vld [vmem:[%s1 + $0x550] sm:$0xff]
    %v691 = vld [vmem:[%s1 + $0x558] sm:$0xff]
    %v692 = vld [vmem:[%s1 + $0x560] sm:$0xff]
    %v693 = vld [vmem:[%s1 + $0x568] sm:$0xff]
    %v694 = vld [vmem:[%s1 + $0x570] sm:$0xff]
    %v695 = vld [vmem:[%s1 + $0x578] sm:$0xff]
    %v696 = vld [vmem:[%s1 + $0x580] sm:$0xff]
    %v697 = vld [vmem:[%s1 + $0x588] sm:$0xff]
    %v698 = vld [vmem:[%s1 + $0x590] sm:$0xff]
    %v699 = vld [vmem:[%s1 + $0x598] sm:$0xff]
    %v700 = vld [vmem:[%s1 + $0x5a0] sm:$0xff]
    %v701 = vld [vmem:[%s1 + $0x5a8] sm:$0xff]
    %v702 = vld [vmem:[%s1 + $0x5b0] sm:$0xff]
    %v703 = vld [vmem:[%s1 + $0x5b8] sm:$0xff]
    %v704 = vld [vmem:[%s1 + $0x5c0] sm:$0xff]
    %v705 = vld [vmem:[%s1 + $0x5c8] sm:$0xff]
    %v706 = vld [vmem:[%s1 + $0x5d0] sm:$0xff]
    %v707 = vld [vmem:[%s1 + $0x5d8] sm:$0xff]
    %v708 = vld [vmem:[%s1 + $0x5e0] sm:$0xff]
    %v709 = vld [vmem:[%s1 + $0x5e8] sm:$0xff]
    %v710 = vld [vmem:[%s1 + $0x5f0] sm:$0xff]
    %v711 = vld [vmem:[%s1 + $0x5f8] sm:$0xff]
    %v712 = vpack.c.bf16 %v528, %v520
    %v713 = vpack.c.bf16 %v529, %v521
    %v714 = vpack.c.bf16 %v530, %v522
    %v715 = vpack.c.bf16 %v531, %v523
    %v716 = vpack.c.bf16 %v532, %v524
    %v717 = vpack.c.bf16 %v533, %v525
    %v718 = vpack.c.bf16 %v534, %v526
    %v719 = vpack.c.bf16 %v535, %v527
    %v720 = vpack.c.bf16 %v544, %v536
    %v721 = vpack.c.bf16 %v545, %v537
    %v722 = vpack.c.bf16 %v546, %v538
    %v723 = vpack.c.bf16 %v547, %v539
    %v724 = vpack.c.bf16 %v548, %v540
    %v725 = vpack.c.bf16 %v549, %v541
    %v726 = vpack.c.bf16 %v550, %v542
    %v727 = vpack.c.bf16 %v551, %v543
    %v728 = vpack.c.bf16 %v560, %v552
    %v729 = vpack.c.bf16 %v561, %v553
    %v730 = vpack.c.bf16 %v562, %v554
    %v731 = vpack.c.bf16 %v563, %v555
    %v732 = vpack.c.bf16 %v564, %v556
    %v733 = vpack.c.bf16 %v565, %v557
    %v734 = vpack.c.bf16 %v566, %v558
    %v735 = vpack.c.bf16 %v567, %v559
    %v736 = vpack.c.bf16 %v576, %v568
    %v737 = vpack.c.bf16 %v577, %v569
    %v738 = vpack.c.bf16 %v578, %v570
    %v739 = vpack.c.bf16 %v579, %v571
    %v740 = vpack.c.bf16 %v580, %v572
    %v741 = vpack.c.bf16 %v581, %v573
    %v742 = vpack.c.bf16 %v582, %v574
    %v743 = vpack.c.bf16 %v583, %v575
    %v744 = vpack.c.bf16 %v592, %v584
    %v745 = vpack.c.bf16 %v593, %v585
    %v746 = vpack.c.bf16 %v594, %v586
    %v747 = vpack.c.bf16 %v595, %v587
    %v748 = vpack.c.bf16 %v596, %v588
    %v749 = vpack.c.bf16 %v597, %v589
    %v750 = vpack.c.bf16 %v598, %v590
    %v751 = vpack.c.bf16 %v599, %v591
    %v752 = vpack.c.bf16 %v608, %v600
    %v753 = vpack.c.bf16 %v609, %v601
    %v754 = vpack.c.bf16 %v610, %v602
    %v755 = vpack.c.bf16 %v611, %v603
    %v756 = vpack.c.bf16 %v612, %v604
    %v757 = vpack.c.bf16 %v613, %v605
    %v758 = vpack.c.bf16 %v614, %v606
    %v759 = vpack.c.bf16 %v615, %v607
    %v760 = vpack.c.bf16 %v624, %v616
    %v761 = vpack.c.bf16 %v625, %v617
    %v762 = vpack.c.bf16 %v626, %v618
    %v763 = vpack.c.bf16 %v627, %v619
    %v764 = vpack.c.bf16 %v628, %v620
    %v765 = vpack.c.bf16 %v629, %v621
    %v766 = vpack.c.bf16 %v630, %v622
    %v767 = vpack.c.bf16 %v631, %v623
    %v768 = vpack.c.bf16 %v640, %v632
    %v769 = vpack.c.bf16 %v641, %v633
    %v770 = vpack.c.bf16 %v642, %v634
    %v771 = vpack.c.bf16 %v643, %v635
    %v772 = vpack.c.bf16 %v644, %v636
    %v773 = vpack.c.bf16 %v645, %v637
    %v774 = vpack.c.bf16 %v646, %v638
    %v775 = vpack.c.bf16 %v647, %v639
    %v776 = vpack.c.bf16 %v656, %v648
    %v777 = vpack.c.bf16 %v657, %v649
    %v778 = vpack.c.bf16 %v658, %v650
    %v779 = vpack.c.bf16 %v659, %v651
    %v780 = vpack.c.bf16 %v660, %v652
    %v781 = vpack.c.bf16 %v661, %v653
    %v782 = vpack.c.bf16 %v662, %v654
    %v783 = vpack.c.bf16 %v663, %v655
    %v784 = vpack.c.bf16 %v672, %v664
    %v785 = vpack.c.bf16 %v673, %v665
    %v786 = vpack.c.bf16 %v674, %v666
    %v787 = vpack.c.bf16 %v675, %v667
    %v788 = vpack.c.bf16 %v676, %v668
    %v789 = vpack.c.bf16 %v677, %v669
    %v790 = vpack.c.bf16 %v678, %v670
    %v791 = vpack.c.bf16 %v679, %v671
    %v792 = vpack.c.bf16 %v688, %v680
    %v793 = vpack.c.bf16 %v689, %v681
    %v794 = vpack.c.bf16 %v690, %v682
    %v795 = vpack.c.bf16 %v691, %v683
    %v796 = vpack.c.bf16 %v692, %v684
    %v797 = vpack.c.bf16 %v693, %v685
    %v798 = vpack.c.bf16 %v694, %v686
    %v799 = vpack.c.bf16 %v695, %v687
    %v800 = vpack.c.bf16 %v704, %v696
    %v801 = vpack.c.bf16 %v705, %v697
    %v802 = vpack.c.bf16 %v706, %v698
    %v803 = vpack.c.bf16 %v707, %v699
    %v804 = vpack.c.bf16 %v708, %v700
    %v805 = vpack.c.bf16 %v709, %v701
    %v806 = vpack.c.bf16 %v710, %v702
    %v807 = vpack.c.bf16 %v711, %v703
    %v808 = vpack.c.bf16 %v270, %v268
    %v809 = vpack.c.bf16 %v271, %v269
    %v810 = vpack.c.bf16 %v274, %v272
    %v811 = vpack.c.bf16 %v275, %v273
    %v812 = vpack.c.bf16 %v278, %v276
    %v813 = vpack.c.bf16 %v279, %v277
    %v814 = vpack.c.bf16 %v282, %v280
    %v815 = vpack.c.bf16 %v283, %v281
    %v816 = vpack.c.bf16 %v286, %v284
    %v817 = vpack.c.bf16 %v287, %v285
    %v818 = vpack.c.bf16 %v290, %v288
    %v819 = vpack.c.bf16 %v291, %v289
    %v820 = vpack.c.bf16 %v294, %v292
    %v821 = vpack.c.bf16 %v295, %v293
    %v822 = vpack.c.bf16 %v298, %v296
    %v823 = vpack.c.bf16 %v299, %v297
    %v824 = vpack.c.bf16 %v302, %v300
    %v825 = vpack.c.bf16 %v303, %v301
    %v826 = vpack.c.bf16 %v306, %v304
    %v827 = vpack.c.bf16 %v307, %v305
    %v828 = vpack.c.bf16 %v310, %v308
    %v829 = vpack.c.bf16 %v311, %v309
    %v830 = vpack.c.bf16 %v314, %v312
    %v831 = vpack.c.bf16 %v315, %v313
    %v832 = vpack.c.bf16 %v318, %v316
    %v833 = vpack.c.bf16 %v319, %v317
    %v834 = vpack.c.bf16 %v322, %v320
    %v835 = vpack.c.bf16 %v323, %v321
    %v836 = vpack.c.bf16 %v326, %v324
    %v837 = vpack.c.bf16 %v327, %v325
    %v838 = vpack.c.bf16 %v330, %v328
    %v839 = vpack.c.bf16 %v331, %v329
    %v840 = vpack.c.bf16 %v334, %v332
    %v841 = vpack.c.bf16 %v335, %v333
    %v842 = vpack.c.bf16 %v338, %v336
    %v843 = vpack.c.bf16 %v339, %v337
    %v844 = vpack.c.bf16 %v342, %v340
    %v845 = vpack.c.bf16 %v343, %v341
    %v846 = vpack.c.bf16 %v346, %v344
    %v847 = vpack.c.bf16 %v347, %v345
    %v848 = vpack.c.bf16 %v350, %v348
    %v849 = vpack.c.bf16 %v351, %v349
    %v850 = vpack.c.bf16 %v354, %v352
    %v851 = vpack.c.bf16 %v355, %v353
    %v852 = vpack.c.bf16 %v358, %v356
    %v853 = vpack.c.bf16 %v359, %v357
    %v854 = vpack.c.bf16 %v362, %v360
    %v855 = vpack.c.bf16 %v363, %v361
    %v856 = vpack.c.bf16 %v366, %v364
    %v857 = vpack.c.bf16 %v367, %v365
    %v858 = vpack.c.bf16 %v370, %v368
    %v859 = vpack.c.bf16 %v371, %v369
    %v860 = vpack.c.bf16 %v374, %v372
    %v861 = vpack.c.bf16 %v375, %v373
    %v862 = vpack.c.bf16 %v378, %v376
    %v863 = vpack.c.bf16 %v379, %v377
    %v864 = vpack.c.bf16 %v382, %v380
    %v865 = vpack.c.bf16 %v383, %v381
    %v866 = vpack.c.bf16 %v386, %v384
    %v867 = vpack.c.bf16 %v387, %v385
    %v868 = vpack.c.bf16 %v390, %v388
    %v869 = vpack.c.bf16 %v391, %v389
    %v870 = vpack.c.bf16 %v394, %v392
    %v871 = vpack.c.bf16 %v395, %v393
    %v872 = vpack.c.bf16 %v398, %v396
    %v873 = vpack.c.bf16 %v399, %v397
    %v874 = vpack.c.bf16 %v402, %v400
    %v875 = vpack.c.bf16 %v403, %v401
    %v876 = vpack.c.bf16 %v406, %v404
    %v877 = vpack.c.bf16 %v407, %v405
    %v878 = vpack.c.bf16 %v410, %v408
    %v879 = vpack.c.bf16 %v411, %v409
    %v880 = vpack.c.bf16 %v414, %v412
    %v881 = vpack.c.bf16 %v415, %v413
    %v882 = vpack.c.bf16 %v418, %v416
    %v883 = vpack.c.bf16 %v419, %v417
    %v884 = vpack.c.bf16 %v422, %v420
    %v885 = vpack.c.bf16 %v423, %v421
    %v886 = vpack.c.bf16 %v426, %v424
    %v887 = vpack.c.bf16 %v427, %v425
    %v888 = vpack.c.bf16 %v430, %v428
    %v889 = vpack.c.bf16 %v431, %v429
    %v890 = vpack.c.bf16 %v434, %v432
    %v891 = vpack.c.bf16 %v435, %v433
    %v892 = vpack.c.bf16 %v438, %v436
    %v893 = vpack.c.bf16 %v439, %v437
    %v894 = vpack.c.bf16 %v442, %v440
    %v895 = vpack.c.bf16 %v443, %v441
    %v896 = vpack.c.bf16 %v446, %v444
    %v897 = vpack.c.bf16 %v447, %v445
    %v898 = vpack.c.bf16 %v450, %v448
    %v899 = vpack.c.bf16 %v451, %v449
    %v900 = vpack.c.bf16 %v454, %v452
    %v901 = vpack.c.bf16 %v455, %v453
    %v902 = vpack.c.bf16 %v458, %v456
    %v903 = vpack.c.bf16 %v459, %v457
    %v904 = vpack.c.bf16 %v462, %v460
    %v905 = vpack.c.bf16 %v463, %v461
    %v906 = vpack.c.bf16 %v466, %v464
    %v907 = vpack.c.bf16 %v467, %v465
    %v908 = vpack.c.bf16 %v470, %v468
    %v909 = vpack.c.bf16 %v471, %v469
    %v910 = vpack.c.bf16 %v474, %v472
    %v911 = vpack.c.bf16 %v475, %v473
    %v912 = vpack.c.bf16 %v478, %v476
    %v913 = vpack.c.bf16 %v479, %v477
    %v914 = vpack.c.bf16 %v482, %v480
    %v915 = vpack.c.bf16 %v483, %v481
    %v916 = vpack.c.bf16 %v486, %v484
    %v917 = vpack.c.bf16 %v487, %v485
    %v918 = vpack.c.bf16 %v490, %v488
    %v919 = vpack.c.bf16 %v491, %v489
    %v920 = vpack.c.bf16 %v494, %v492
    %v921 = vpack.c.bf16 %v495, %v493
    %v922 = vpack.c.bf16 %v498, %v496
    %v923 = vpack.c.bf16 %v499, %v497
    %v924 = vpack.c.bf16 %v502, %v500
    %v925 = vpack.c.bf16 %v503, %v501
    %v926 = vpack.c.bf16 %v506, %v504
    %v927 = vpack.c.bf16 %v507, %v505
    %v928 = vpack.c.bf16 %v510, %v508
    %v929 = vpack.c.bf16 %v511, %v509
    %v930 = vpack.c.bf16 %v514, %v512
    %v931 = vpack.c.bf16 %v515, %v513
    %v932 = vpack.c.bf16 %v518, %v516
    %v933 = vpack.c.bf16 %v519, %v517
    %vm934 = vcmask 916480
    %v936 = vsel %vm934, %v719, 0
    %v939 = vsel %vm934, %v727, 0
    %v942 = vsel %vm934, %v735, 0
    %v945 = vsel %vm934, %v743, 0
    %v948 = vsel %vm934, %v751, 0
    %v951 = vsel %vm934, %v759, 0
    %v954 = vsel %vm934, %v767, 0
    %v957 = vsel %vm934, %v775, 0
    %v960 = vsel %vm934, %v783, 0
    %v963 = vsel %vm934, %v791, 0
    %v966 = vsel %vm934, %v799, 0
    %v969 = vsel %vm934, %v807, 0
    %971 = vmatprep.subr.bf16.mxu0 %v809
    %972 = vmatpush1.bf16.msra.mxu0 %v808
    %973 = vmatprep.subr.bf16.mxu0 %v811
    %974 = vmatpush1.bf16.msra.mxu0 %v810
    %975 = vmatprep.subr.bf16.mxu0 %v813
    %976 = vmatpush1.bf16.msra.mxu0 %v812
    %977 = vmatprep.subr.bf16.mxu0 %v815
    %978 = vmatpush1.bf16.msra.mxu0 %v814
    %979 = vmatprep.subr.bf16.mxu0 %v817
    %980 = vmatpush1.bf16.msra.mxu0 %v816
    %981 = vmatprep.subr.bf16.mxu0 %v819
    %982 = vmatpush1.bf16.msra.mxu0 %v818
    %983 = vmatprep.subr.bf16.mxu0 %v821
    %984 = vmatpush1.bf16.msra.mxu0 %v820
    %985 = vmatprep.subr.bf16.mxu0 %v823
    %986 = vmatpush1.bf16.msra.mxu0 %v822
    %987 = vmatprep.subr.bf16.mxu0 %v825
    %988 = vmatpush1.bf16.msra.mxu0 %v824
    %989 = vmatprep.subr.bf16.mxu0 %v827
    %990 = vmatpush1.bf16.msra.mxu0 %v826
    %991 = vmatprep.subr.bf16.mxu0 %v829
    %992 = vmatpush1.bf16.msra.mxu0 %v828
    %993 = vmatprep.subr.bf16.mxu0 %v831
    %994 = vmatpush1.bf16.msra.mxu0 %v830
    %995 = vmatprep.subr.bf16.mxu0 %v833
    %996 = vmatpush1.bf16.msra.mxu0 %v832
    %997 = vmatprep.subr.bf16.mxu0 %v835
    %998 = vmatpush1.bf16.msra.mxu0 %v834
    %999 = vmatprep.subr.bf16.mxu0 %v837
    %1000 = vmatpush1.bf16.msra.mxu0 %v836
    %1001 = vmatprep.subr.bf16.mxu0 %v839
    %1002 = vmatpush1.bf16.msra.mxu0 %v838
    %1003 = vmatprep.mubr.bf16.mxu0 %v713
    %1004 = vmatmul.mubr.bf16.gmra.mrb[0].mxu0 %v712
    %v1005 = vpop.f32.mrb[0].mxu0
    %v1006 = vadd.f32 0.0, %v1005
    %v1007 = vpop.f32.mrb[0].mxu0
    %v1008 = vadd.f32 0.0, %v1007
    %v1009 = vpop.f32.mrb[0].mxu0
    %v1010 = vadd.f32 0.0, %v1009
    %v1011 = vpop.f32.mrb[0].mxu0
    %v1012 = vadd.f32 0.0, %v1011
    %1013 = vmatprep.mubr.bf16.mxu0 %v721
    %1014 = vmatmul.mubr.bf16.gmra.mrb[0].mxu0 %v720
    %v1015 = vpop.f32.mrb[0].mxu0
    %v1016 = vadd.f32 0.0, %v1015
    %v1017 = vpop.f32.mrb[0].mxu0
    %v1018 = vadd.f32 0.0, %v1017
    %v1019 = vpop.f32.mrb[0].mxu0
    %v1020 = vadd.f32 0.0, %v1019
    %v1021 = vpop.f32.mrb[0].mxu0
    %v1022 = vadd.f32 0.0, %v1021
    %1023 = vmatprep.mubr.bf16.mxu0 %v729
    %1024 = vmatmul.mubr.bf16.gmra.mrb[0].mxu0 %v728
    %v1025 = vpop.f32.mrb[0].mxu0
    %v1026 = vadd.f32 0.0, %v1025
    %v1027 = vpop.f32.mrb[0].mxu0
    %v1028 = vadd.f32 0.0, %v1027
    %v1029 = vpop.f32.mrb[0].mxu0
    %v1030 = vadd.f32 0.0, %v1029
    %v1031 = vpop.f32.mrb[0].mxu0
    %v1032 = vadd.f32 0.0, %v1031
    %1033 = vmatprep.mubr.bf16.mxu0 %v737
    %1034 = vmatmul.mubr.bf16.gmra.mrb[0].mxu0 %v736
    %v1035 = vpop.f32.mrb[0].mxu0
    %v1036 = vadd.f32 0.0, %v1035
    %v1037 = vpop.f32.mrb[0].mxu0
    %v1038 = vadd.f32 0.0, %v1037
    %v1039 = vpop.f32.mrb[0].mxu0
    %v1040 = vadd.f32 0.0, %v1039
    %v1041 = vpop.f32.mrb[0].mxu0
    %v1042 = vadd.f32 0.0, %v1041
    %1043 = vmatprep.mubr.bf16.mxu0 %v745
    %1044 = vmatmul.mubr.bf16.gmra.mrb[0].mxu0 %v744
    %v1045 = vpop.f32.mrb[0].mxu0
    %v1046 = vadd.f32 0.0, %v1045
    %v1047 = vpop.f32.mrb[0].mxu0
    %v1048 = vadd.f32 0.0, %v1047
    %v1049 = vpop.f32.mrb[0].mxu0
    %v1050 = vadd.f32 0.0, %v1049
    %v1051 = vpop.f32.mrb[0].mxu0
    %v1052 = vadd.f32 0.0, %v1051
    %1053 = vmatprep.mubr.bf16.mxu0 %v753
    %1054 = vmatmul.mubr.bf16.gmra.mrb[0].mxu0 %v752
    %v1055 = vpop.f32.mrb[0].mxu0
    %v1056 = vadd.f32 0.0, %v1055
    %v1057 = vpop.f32.mrb[0].mxu0
    %v1058 = vadd.f32 0.0, %v1057
    %v1059 = vpop.f32.mrb[0].mxu0
    %v1060 = vadd.f32 0.0, %v1059
    %v1061 = vpop.f32.mrb[0].mxu0
    %v1062 = vadd.f32 0.0, %v1061
    %1063 = vmatprep.mubr.bf16.mxu0 %v761
    %1064 = vmatmul.mubr.bf16.gmra.mrb[0].mxu0 %v760
    %v1065 = vpop.f32.mrb[0].mxu0
    %v1066 = vadd.f32 0.0, %v1065
    %v1067 = vpop.f32.mrb[0].mxu0
    %v1068 = vadd.f32 0.0, %v1067
    %v1069 = vpop.f32.mrb[0].mxu0
    %v1070 = vadd.f32 0.0, %v1069
    %v1071 = vpop.f32.mrb[0].mxu0
    %v1072 = vadd.f32 0.0, %v1071
    %1073 = vmatprep.mubr.bf16.mxu0 %v769
    %1074 = vmatmul.mubr.bf16.gmra.mrb[0].mxu0 %v768
    %v1075 = vpop.f32.mrb[0].mxu0
    %v1076 = vadd.f32 0.0, %v1075
    %v1077 = vpop.f32.mrb[0].mxu0
    %v1078 = vadd.f32 0.0, %v1077
    %v1079 = vpop.f32.mrb[0].mxu0
    %v1080 = vadd.f32 0.0, %v1079
    %v1081 = vpop.f32.mrb[0].mxu0
    %v1082 = vadd.f32 0.0, %v1081
    %1083 = vmatprep.mubr.bf16.mxu0 %v777
    %1084 = vmatmul.mubr.bf16.gmra.mrb[0].mxu0 %v776
    %v1085 = vpop.f32.mrb[0].mxu0
    %v1086 = vadd.f32 0.0, %v1085
    %v1087 = vpop.f32.mrb[0].mxu0
    %v1088 = vadd.f32 0.0, %v1087
    %v1089 = vpop.f32.mrb[0].mxu0
    %v1090 = vadd.f32 0.0, %v1089
    %v1091 = vpop.f32.mrb[0].mxu0
    %v1092 = vadd.f32 0.0, %v1091
    %1093 = vmatprep.mubr.bf16.mxu0 %v785
    %1094 = vmatmul.mubr.bf16.gmra.mrb[0].mxu0 %v784
    %v1095 = vpop.f32.mrb[0].mxu0
    %v1096 = vadd.f32 0.0, %v1095
    %v1097 = vpop.f32.mrb[0].mxu0
    %v1098 = vadd.f32 0.0, %v1097
    %v1099 = vpop.f32.mrb[0].mxu0
    %v1100 = vadd.f32 0.0, %v1099
    %v1101 = vpop.f32.mrb[0].mxu0
    %v1102 = vadd.f32 0.0, %v1101
    %1103 = vmatprep.mubr.bf16.mxu0 %v793
    %1104 = vmatmul.mubr.bf16.gmra.mrb[0].mxu0 %v792
    %v1105 = vpop.f32.mrb[0].mxu0
    %v1106 = vadd.f32 0.0, %v1105
    %v1107 = vpop.f32.mrb[0].mxu0
    %v1108 = vadd.f32 0.0, %v1107
    %v1109 = vpop.f32.mrb[0].mxu0
    %v1110 = vadd.f32 0.0, %v1109
    %v1111 = vpop.f32.mrb[0].mxu0
    %v1112 = vadd.f32 0.0, %v1111
    %1113 = vmatprep.mubr.bf16.mxu0 %v801
    %1114 = vmatmul.mubr.bf16.gmra.mrb[0].mxu0 %v800
    %v1115 = vpop.f32.mrb[0].mxu0
    %v1116 = vadd.f32 0.0, %v1115
    %v1117 = vpop.f32.mrb[0].mxu0
    %v1118 = vadd.f32 0.0, %v1117
    %v1119 = vpop.f32.mrb[0].mxu0
    %v1120 = vadd.f32 0.0, %v1119
    %v1121 = vpop.f32.mrb[0].mxu0
    %v1122 = vadd.f32 0.0, %v1121
    %1123 = vdwg.mxu0
    %1124 = vmatprep.subr.bf16.mxu0 %v841
    %1125 = vmatpush1.bf16.msra.mxu0 %v840
    %1126 = vmatprep.subr.bf16.mxu0 %v843
    %1127 = vmatpush1.bf16.msra.mxu0 %v842
    %1128 = vmatprep.subr.bf16.mxu0 %v845
    %1129 = vmatpush1.bf16.msra.mxu0 %v844
    %1130 = vmatprep.subr.bf16.mxu0 %v847
    %1131 = vmatpush1.bf16.msra.mxu0 %v846
    %1132 = vmatprep.subr.bf16.mxu0 %v849
    %1133 = vmatpush1.bf16.msra.mxu0 %v848
    %1134 = vmatprep.subr.bf16.mxu0 %v851
    %1135 = vmatpush1.bf16.msra.mxu0 %v850
    %1136 = vmatprep.subr.bf16.mxu0 %v853
    %1137 = vmatpush1.bf16.msra.mxu0 %v852
    %1138 = vmatprep.subr.bf16.mxu0 %v855
    %1139 = vmatpush1.bf16.msra.mxu0 %v854
    %1140 = vmatprep.subr.bf16.mxu0 %v857
    %1141 = vmatpush1.bf16.msra.mxu0 %v856
    %1142 = vmatprep.subr.bf16.mxu0 %v859
    %1143 = vmatpush1.bf16.msra.mxu0 %v858
    %1144 = vmatprep.subr.bf16.mxu0 %v861
    %1145 = vmatpush1.bf16.msra.mxu0 %v860
    %1146 = vmatprep.subr.bf16.mxu0 %v863
    %1147 = vmatpush1.bf16.msra.mxu0 %v862
    %1148 = vmatprep.subr.bf16.mxu0 %v865
    %1149 = vmatpush1.bf16.msra.mxu0 %v864
    %1150 = vmatprep.subr.bf16.mxu0 %v867
    %1151 = vmatpush1.bf16.msra.mxu0 %v866
    %1152 = vmatprep.subr.bf16.mxu0 %v869
    %1153 = vmatpush1.bf16.msra.mxu0 %v868
    %1154 = vmatprep.subr.bf16.mxu0 %v871
    %1155 = vmatpush1.bf16.msra.mxu0 %v870
    %1156 = vmatprep.mubr.bf16.mxu0 %v715
    %1157 = vmatmul.mubr.bf16.gmra.mrb[0].mxu0 %v714
    %v1158 = vpop.f32.mrb[0].mxu0
    %v1159 = vadd.f32 %v1006, %v1158
    %v1160 = vpop.f32.mrb[0].mxu0
    %v1161 = vadd.f32 %v1008, %v1160
    %v1162 = vpop.f32.mrb[0].mxu0
    %v1163 = vadd.f32 %v1010, %v1162
    %v1164 = vpop.f32.mrb[0].mxu0
    %v1165 = vadd.f32 %v1012, %v1164
    %1166 = vmatprep.mubr.bf16.mxu0 %v723
    %1167 = vmatmul.mubr.bf16.gmra.mrb[0].mxu0 %v722
    %v1168 = vpop.f32.mrb[0].mxu0
    %v1169 = vadd.f32 %v1016, %v1168
    %v1170 = vpop.f32.mrb[0].mxu0
    %v1171 = vadd.f32 %v1018, %v1170
    %v1172 = vpop.f32.mrb[0].mxu0
    %v1173 = vadd.f32 %v1020, %v1172
    %v1174 = vpop.f32.mrb[0].mxu0
    %v1175 = vadd.f32 %v1022, %v1174
    %1176 = vmatprep.mubr.bf16.mxu0 %v731
    %1177 = vmatmul.mubr.bf16.gmra.mrb[0].mxu0 %v730
    %v1178 = vpop.f32.mrb[0].mxu0
    %v1179 = vadd.f32 %v1026, %v1178
    %v1180 = vpop.f32.mrb[0].mxu0
    %v1181 = vadd.f32 %v1028, %v1180
    %v1182 = vpop.f32.mrb[0].mxu0
    %v1183 = vadd.f32 %v1030, %v1182
    %v1184 = vpop.f32.mrb[0].mxu0
    %v1185 = vadd.f32 %v1032, %v1184
    %1186 = vmatprep.mubr.bf16.mxu0 %v739
    %1187 = vmatmul.mubr.bf16.gmra.mrb[0].mxu0 %v738
    %v1188 = vpop.f32.mrb[0].mxu0
    %v1189 = vadd.f32 %v1036, %v1188
    %v1190 = vpop.f32.mrb[0].mxu0
    %v1191 = vadd.f32 %v1038, %v1190
    %v1192 = vpop.f32.mrb[0].mxu0
    %v1193 = vadd.f32 %v1040, %v1192
    %v1194 = vpop.f32.mrb[0].mxu0
    %v1195 = vadd.f32 %v1042, %v1194
    %1196 = vmatprep.mubr.bf16.mxu0 %v747
    %1197 = vmatmul.mubr.bf16.gmra.mrb[0].mxu0 %v746
    %v1198 = vpop.f32.mrb[0].mxu0
    %v1199 = vadd.f32 %v1046, %v1198
    %v1200 = vpop.f32.mrb[0].mxu0
    %v1201 = vadd.f32 %v1048, %v1200
    %v1202 = vpop.f32.mrb[0].mxu0
    %v1203 = vadd.f32 %v1050, %v1202
    %v1204 = vpop.f32.mrb[0].mxu0
    %v1205 = vadd.f32 %v1052, %v1204
    %1206 = vmatprep.mubr.bf16.mxu0 %v755
    %1207 = vmatmul.mubr.bf16.gmra.mrb[0].mxu0 %v754
    %v1208 = vpop.f32.mrb[0].mxu0
    %v1209 = vadd.f32 %v1056, %v1208
    %v1210 = vpop.f32.mrb[0].mxu0
    %v1211 = vadd.f32 %v1058, %v1210
    %v1212 = vpop.f32.mrb[0].mxu0
    %v1213 = vadd.f32 %v1060, %v1212
    %v1214 = vpop.f32.mrb[0].mxu0
    %v1215 = vadd.f32 %v1062, %v1214
    %1216 = vmatprep.mubr.bf16.mxu0 %v763
    %1217 = vmatmul.mubr.bf16.gmra.mrb[0].mxu0 %v762
    %v1218 = vpop.f32.mrb[0].mxu0
    %v1219 = vadd.f32 %v1066, %v1218
    %v1220 = vpop.f32.mrb[0].mxu0
    %v1221 = vadd.f32 %v1068, %v1220
    %v1222 = vpop.f32.mrb[0].mxu0
    %v1223 = vadd.f32 %v1070, %v1222
    %v1224 = vpop.f32.mrb[0].mxu0
    %v1225 = vadd.f32 %v1072, %v1224
    %1226 = vmatprep.mubr.bf16.mxu0 %v771
    %1227 = vmatmul.mubr.bf16.gmra.mrb[0].mxu0 %v770
    %v1228 = vpop.f32.mrb[0].mxu0
    %v1229 = vadd.f32 %v1076, %v1228
    %v1230 = vpop.f32.mrb[0].mxu0
    %v1231 = vadd.f32 %v1078, %v1230
    %v1232 = vpop.f32.mrb[0].mxu0
    %v1233 = vadd.f32 %v1080, %v1232
    %v1234 = vpop.f32.mrb[0].mxu0
    %v1235 = vadd.f32 %v1082, %v1234
    %1236 = vmatprep.mubr.bf16.mxu0 %v779
    %1237 = vmatmul.mubr.bf16.gmra.mrb[0].mxu0 %v778
    %v1238 = vpop.f32.mrb[0].mxu0
    %v1239 = vadd.f32 %v1086, %v1238
    %v1240 = vpop.f32.mrb[0].mxu0
    %v1241 = vadd.f32 %v1088, %v1240
    %v1242 = vpop.f32.mrb[0].mxu0
    %v1243 = vadd.f32 %v1090, %v1242
    %v1244 = vpop.f32.mrb[0].mxu0
    %v1245 = vadd.f32 %v1092, %v1244
    %1246 = vmatprep.mubr.bf16.mxu0 %v787
    %1247 = vmatmul.mubr.bf16.gmra.mrb[0].mxu0 %v786
    %v1248 = vpop.f32.mrb[0].mxu0
    %v1249 = vadd.f32 %v1096, %v1248
    %v1250 = vpop.f32.mrb[0].mxu0
    %v1251 = vadd.f32 %v1098, %v1250
    %v1252 = vpop.f32.mrb[0].mxu0
    %v1253 = vadd.f32 %v1100, %v1252
    %v1254 = vpop.f32.mrb[0].mxu0
    %v1255 = vadd.f32 %v1102, %v1254
    %1256 = vmatprep.mubr.bf16.mxu0 %v795
    %1257 = vmatmul.mubr.bf16.gmra.mrb[0].mxu0 %v794
    %v1258 = vpop.f32.mrb[0].mxu0
    %v1259 = vadd.f32 %v1106, %v1258
    %v1260 = vpop.f32.mrb[0].mxu0
    %v1261 = vadd.f32 %v1108, %v1260
    %v1262 = vpop.f32.mrb[0].mxu0
    %v1263 = vadd.f32 %v1110, %v1262
    %v1264 = vpop.f32.mrb[0].mxu0
    %v1265 = vadd.f32 %v1112, %v1264
    %1266 = vmatprep.mubr.bf16.mxu0 %v803
    %1267 = vmatmul.mubr.bf16.gmra.mrb[0].mxu0 %v802
    %v1268 = vpop.f32.mrb[0].mxu0
    %v1269 = vadd.f32 %v1116, %v1268
    %v1270 = vpop.f32.mrb[0].mxu0
    %v1271 = vadd.f32 %v1118, %v1270
    %v1272 = vpop.f32.mrb[0].mxu0
    %v1273 = vadd.f32 %v1120, %v1272
    %v1274 = vpop.f32.mrb[0].mxu0
    %v1275 = vadd.f32 %v1122, %v1274
    %1276 = vdwg.mxu0
    %1277 = vmatprep.subr.bf16.mxu0 %v873
    %1278 = vmatpush1.bf16.msra.mxu0 %v872
    %1279 = vmatprep.subr.bf16.mxu0 %v875
    %1280 = vmatpush1.bf16.msra.mxu0 %v874
    %1281 = vmatprep.subr.bf16.mxu0 %v877
    %1282 = vmatpush1.bf16.msra.mxu0 %v876
    %1283 = vmatprep.subr.bf16.mxu0 %v879
    %1284 = vmatpush1.bf16.msra.mxu0 %v878
    %1285 = vmatprep.subr.bf16.mxu0 %v881
    %1286 = vmatpush1.bf16.msra.mxu0 %v880
    %1287 = vmatprep.subr.bf16.mxu0 %v883
    %1288 = vmatpush1.bf16.msra.mxu0 %v882
    %1289 = vmatprep.subr.bf16.mxu0 %v885
    %1290 = vmatpush1.bf16.msra.mxu0 %v884
    %1291 = vmatprep.subr.bf16.mxu0 %v887
    %1292 = vmatpush1.bf16.msra.mxu0 %v886
    %1293 = vmatprep.subr.bf16.mxu0 %v889
    %1294 = vmatpush1.bf16.msra.mxu0 %v888
    %1295 = vmatprep.subr.bf16.mxu0 %v891
    %1296 = vmatpush1.bf16.msra.mxu0 %v890
    %1297 = vmatprep.subr.bf16.mxu0 %v893
    %1298 = vmatpush1.bf16.msra.mxu0 %v892
    %1299 = vmatprep.subr.bf16.mxu0 %v895
    %1300 = vmatpush1.bf16.msra.mxu0 %v894
    %1301 = vmatprep.subr.bf16.mxu0 %v897
    %1302 = vmatpush1.bf16.msra.mxu0 %v896
    %1303 = vmatprep.subr.bf16.mxu0 %v899
    %1304 = vmatpush1.bf16.msra.mxu0 %v898
    %1305 = vmatprep.subr.bf16.mxu0 %v901
    %1306 = vmatpush1.bf16.msra.mxu0 %v900
    %1307 = vmatprep.subr.bf16.mxu0 %v903
    %1308 = vmatpush1.bf16.msra.mxu0 %v902
    %1309 = vmatprep.mubr.bf16.mxu0 %v717
    %1310 = vmatmul.mubr.bf16.gmra.mrb[0].mxu0 %v716
    %v1311 = vpop.f32.mrb[0].mxu0
    %v1312 = vadd.f32 %v1159, %v1311
    %v1313 = vpop.f32.mrb[0].mxu0
    %v1314 = vadd.f32 %v1161, %v1313
    %v1315 = vpop.f32.mrb[0].mxu0
    %v1316 = vadd.f32 %v1163, %v1315
    %v1317 = vpop.f32.mrb[0].mxu0
    %v1318 = vadd.f32 %v1165, %v1317
    %1319 = vmatprep.mubr.bf16.mxu0 %v725
    %1320 = vmatmul.mubr.bf16.gmra.mrb[0].mxu0 %v724
    %v1321 = vpop.f32.mrb[0].mxu0
    %v1322 = vadd.f32 %v1169, %v1321
    %v1323 = vpop.f32.mrb[0].mxu0
    %v1324 = vadd.f32 %v1171, %v1323
    %v1325 = vpop.f32.mrb[0].mxu0
    %v1326 = vadd.f32 %v1173, %v1325
    %v1327 = vpop.f32.mrb[0].mxu0
    %v1328 = vadd.f32 %v1175, %v1327
    %1329 = vmatprep.mubr.bf16.mxu0 %v733
    %1330 = vmatmul.mubr.bf16.gmra.mrb[0].mxu0 %v732
    %v1331 = vpop.f32.mrb[0].mxu0
    %v1332 = vadd.f32 %v1179, %v1331
    %v1333 = vpop.f32.mrb[0].mxu0
    %v1334 = vadd.f32 %v1181, %v1333
    %v1335 = vpop.f32.mrb[0].mxu0
    %v1336 = vadd.f32 %v1183, %v1335
    %v1337 = vpop.f32.mrb[0].mxu0
    %v1338 = vadd.f32 %v1185, %v1337
    %1339 = vmatprep.mubr.bf16.mxu0 %v741
    %1340 = vmatmul.mubr.bf16.gmra.mrb[0].mxu0 %v740
    %v1341 = vpop.f32.mrb[0].mxu0
    %v1342 = vadd.f32 %v1189, %v1341
    %v1343 = vpop.f32.mrb[0].mxu0
    %v1344 = vadd.f32 %v1191, %v1343
    %v1345 = vpop.f32.mrb[0].mxu0
    %v1346 = vadd.f32 %v1193, %v1345
    %v1347 = vpop.f32.mrb[0].mxu0
    %v1348 = vadd.f32 %v1195, %v1347
    %1349 = vmatprep.mubr.bf16.mxu0 %v749
    %1350 = vmatmul.mubr.bf16.gmra.mrb[0].mxu0 %v748
    %v1351 = vpop.f32.mrb[0].mxu0
    %v1352 = vadd.f32 %v1199, %v1351
    %v1353 = vpop.f32.mrb[0].mxu0
    %v1354 = vadd.f32 %v1201, %v1353
    %v1355 = vpop.f32.mrb[0].mxu0
    %v1356 = vadd.f32 %v1203, %v1355
    %v1357 = vpop.f32.mrb[0].mxu0
    %v1358 = vadd.f32 %v1205, %v1357
    %1359 = vmatprep.mubr.bf16.mxu0 %v757
    %1360 = vmatmul.mubr.bf16.gmra.mrb[0].mxu0 %v756
    %v1361 = vpop.f32.mrb[0].mxu0
    %v1362 = vadd.f32 %v1209, %v1361
    %v1363 = vpop.f32.mrb[0].mxu0
    %v1364 = vadd.f32 %v1211, %v1363
    %v1365 = vpop.f32.mrb[0].mxu0
    %v1366 = vadd.f32 %v1213, %v1365
    %v1367 = vpop.f32.mrb[0].mxu0
    %v1368 = vadd.f32 %v1215, %v1367
    %1369 = vmatprep.mubr.bf16.mxu0 %v765
    %1370 = vmatmul.mubr.bf16.gmra.mrb[0].mxu0 %v764
    %v1371 = vpop.f32.mrb[0].mxu0
    %v1372 = vadd.f32 %v1219, %v1371
    %v1373 = vpop.f32.mrb[0].mxu0
    %v1374 = vadd.f32 %v1221, %v1373
    %v1375 = vpop.f32.mrb[0].mxu0
    %v1376 = vadd.f32 %v1223, %v1375
    %v1377 = vpop.f32.mrb[0].mxu0
    %v1378 = vadd.f32 %v1225, %v1377
    %1379 = vmatprep.mubr.bf16.mxu0 %v773
    %1380 = vmatmul.mubr.bf16.gmra.mrb[0].mxu0 %v772
    %v1381 = vpop.f32.mrb[0].mxu0
    %v1382 = vadd.f32 %v1229, %v1381
    %v1383 = vpop.f32.mrb[0].mxu0
    %v1384 = vadd.f32 %v1231, %v1383
    %v1385 = vpop.f32.mrb[0].mxu0
    %v1386 = vadd.f32 %v1233, %v1385
    %v1387 = vpop.f32.mrb[0].mxu0
    %v1388 = vadd.f32 %v1235, %v1387
    %1389 = vmatprep.mubr.bf16.mxu0 %v781
    %1390 = vmatmul.mubr.bf16.gmra.mrb[0].mxu0 %v780
    %v1391 = vpop.f32.mrb[0].mxu0
    %v1392 = vadd.f32 %v1239, %v1391
    %v1393 = vpop.f32.mrb[0].mxu0
    %v1394 = vadd.f32 %v1241, %v1393
    %v1395 = vpop.f32.mrb[0].mxu0
    %v1396 = vadd.f32 %v1243, %v1395
    %v1397 = vpop.f32.mrb[0].mxu0
    %v1398 = vadd.f32 %v1245, %v1397
    %1399 = vmatprep.mubr.bf16.mxu0 %v789
    %1400 = vmatmul.mubr.bf16.gmra.mrb[0].mxu0 %v788
    %v1401 = vpop.f32.mrb[0].mxu0
    %v1402 = vadd.f32 %v1249, %v1401
    %v1403 = vpop.f32.mrb[0].mxu0
    %v1404 = vadd.f32 %v1251, %v1403
    %v1405 = vpop.f32.mrb[0].mxu0
    %v1406 = vadd.f32 %v1253, %v1405
    %v1407 = vpop.f32.mrb[0].mxu0
    %v1408 = vadd.f32 %v1255, %v1407
    %1409 = vmatprep.mubr.bf16.mxu0 %v797
    %1410 = vmatmul.mubr.bf16.gmra.mrb[0].mxu0 %v796
    %v1411 = vpop.f32.mrb[0].mxu0
    %v1412 = vadd.f32 %v1259, %v1411
    %v1413 = vpop.f32.mrb[0].mxu0
    %v1414 = vadd.f32 %v1261, %v1413
    %v1415 = vpop.f32.mrb[0].mxu0
    %v1416 = vadd.f32 %v1263, %v1415
    %v1417 = vpop.f32.mrb[0].mxu0
    %v1418 = vadd.f32 %v1265, %v1417
    %1419 = vmatprep.mubr.bf16.mxu0 %v805
    %1420 = vmatmul.mubr.bf16.gmra.mrb[0].mxu0 %v804
    %v1421 = vpop.f32.mrb[0].mxu0
    %v1422 = vadd.f32 %v1269, %v1421
    %v1423 = vpop.f32.mrb[0].mxu0
    %v1424 = vadd.f32 %v1271, %v1423
    %v1425 = vpop.f32.mrb[0].mxu0
    %v1426 = vadd.f32 %v1273, %v1425
    %v1427 = vpop.f32.mrb[0].mxu0
    %v1428 = vadd.f32 %v1275, %v1427
    %1429 = vdwg.mxu0
    %1430 = vmatprep.subr.bf16.mxu0 %v905
    %1431 = vmatpush1.bf16.msra.mxu0 %v904
    %1432 = vmatprep.subr.bf16.mxu0 %v907
    %1433 = vmatpush1.bf16.msra.mxu0 %v906
    %1434 = vmatprep.subr.bf16.mxu0 %v909
    %1435 = vmatpush1.bf16.msra.mxu0 %v908
    %1436 = vmatprep.subr.bf16.mxu0 %v911
    %1437 = vmatpush1.bf16.msra.mxu0 %v910
    %1438 = vmatprep.subr.bf16.mxu0 %v913
    %1439 = vmatpush1.bf16.msra.mxu0 %v912
    %1440 = vmatprep.subr.bf16.mxu0 %v915
    %1441 = vmatpush1.bf16.msra.mxu0 %v914
    %1442 = vmatprep.subr.bf16.mxu0 %v917
    %1443 = vmatpush1.bf16.msra.mxu0 %v916
    %1444 = vmatprep.subr.bf16.mxu0 %v919
    %1445 = vmatpush1.bf16.msra.mxu0 %v918
    %1446 = vmatprep.subr.bf16.mxu0 %v921
    %1447 = vmatpush1.bf16.msra.mxu0 %v920
    %1448 = vmatprep.subr.bf16.mxu0 %v923
    %1449 = vmatpush1.bf16.msra.mxu0 %v922
    %1450 = vmatprep.subr.bf16.mxu0 %v925
    %1451 = vmatpush1.bf16.msra.mxu0 %v924
    %1452 = vmatprep.subr.bf16.mxu0 %v927
    %1453 = vmatpush1.bf16.msra.mxu0 %v926
    %1454 = vmatprep.subr.bf16.mxu0 %v929
    %1455 = vmatpush1.bf16.msra.mxu0 %v928
    %1456 = vmatprep.subr.bf16.mxu0 %v931
    %1457 = vmatpush1.bf16.msra.mxu0 %v930
    %1458 = vmatprep.subr.bf16.mxu0 %v933
    %1459 = vmatpush1.bf16.msra.mxu0 %v932
    %1460 = vmatprep.subr.bf16.mxu0 0
    %1461 = vmatpush1.bf16.msra.mxu0 0
    %1462 = vmatprep.mubr.bf16.mxu0 %v936
    %1463 = vmatmul.mubr.bf16.gmra.mrb[0].mxu0 %v718
    %v1464 = vpop.f32.mrb[0].mxu0
    %v1465 = vadd.f32 %v1312, %v1464
    %v1466 = vpop.f32.mrb[0].mxu0
    %v1467 = vadd.f32 %v1314, %v1466
    %v1468 = vpop.f32.mrb[0].mxu0
    %v1469 = vadd.f32 %v1316, %v1468
    %v1470 = vpop.f32.mrb[0].mxu0
    %v1471 = vadd.f32 %v1318, %v1470
    %1472 = vmatprep.mubr.bf16.mxu0 %v939
    %1473 = vmatmul.mubr.bf16.gmra.mrb[0].mxu0 %v726
    %v1474 = vpop.f32.mrb[0].mxu0
    %v1475 = vadd.f32 %v1322, %v1474
    %v1476 = vpop.f32.mrb[0].mxu0
    %v1477 = vadd.f32 %v1324, %v1476
    %v1478 = vpop.f32.mrb[0].mxu0
    %v1479 = vadd.f32 %v1326, %v1478
    %v1480 = vpop.f32.mrb[0].mxu0
    %v1481 = vadd.f32 %v1328, %v1480
    %1482 = vmatprep.mubr.bf16.mxu0 %v942
    %1483 = vmatmul.mubr.bf16.gmra.mrb[0].mxu0 %v734
    %v1484 = vpop.f32.mrb[0].mxu0
    %v1485 = vadd.f32 %v1332, %v1484
    %v1486 = vpop.f32.mrb[0].mxu0
    %v1487 = vadd.f32 %v1334, %v1486
    %v1488 = vpop.f32.mrb[0].mxu0
    %v1489 = vadd.f32 %v1336, %v1488
    %v1490 = vpop.f32.mrb[0].mxu0
    %v1491 = vadd.f32 %v1338, %v1490
    %1492 = vmatprep.mubr.bf16.mxu0 %v945
    %1493 = vmatmul.mubr.bf16.gmra.mrb[0].mxu0 %v742
    %v1494 = vpop.f32.mrb[0].mxu0
    %v1495 = vadd.f32 %v1342, %v1494
    %v1496 = vpop.f32.mrb[0].mxu0
    %v1497 = vadd.f32 %v1344, %v1496
    %v1498 = vpop.f32.mrb[0].mxu0
    %v1499 = vadd.f32 %v1346, %v1498
    %v1500 = vpop.f32.mrb[0].mxu0
    %v1501 = vadd.f32 %v1348, %v1500
    %1502 = vmatprep.mubr.bf16.mxu0 %v948
    %1503 = vmatmul.mubr.bf16.gmra.mrb[0].mxu0 %v750
    %v1504 = vpop.f32.mrb[0].mxu0
    %v1505 = vadd.f32 %v1352, %v1504
    %v1506 = vpop.f32.mrb[0].mxu0
    %v1507 = vadd.f32 %v1354, %v1506
    %v1508 = vpop.f32.mrb[0].mxu0
    %v1509 = vadd.f32 %v1356, %v1508
    %v1510 = vpop.f32.mrb[0].mxu0
    %v1511 = vadd.f32 %v1358, %v1510
    %1512 = vmatprep.mubr.bf16.mxu0 %v951
    %1513 = vmatmul.mubr.bf16.gmra.mrb[0].mxu0 %v758
    %v1514 = vpop.f32.mrb[0].mxu0
    %v1515 = vadd.f32 %v1362, %v1514
    %v1516 = vpop.f32.mrb[0].mxu0
    %v1517 = vadd.f32 %v1364, %v1516
    %v1518 = vpop.f32.mrb[0].mxu0
    %v1519 = vadd.f32 %v1366, %v1518
    %v1520 = vpop.f32.mrb[0].mxu0
    %v1521 = vadd.f32 %v1368, %v1520
    %1522 = vmatprep.mubr.bf16.mxu0 %v954
    %1523 = vmatmul.mubr.bf16.gmra.mrb[0].mxu0 %v766
    %v1524 = vpop.f32.mrb[0].mxu0
    %v1525 = vadd.f32 %v1372, %v1524
    %v1526 = vpop.f32.mrb[0].mxu0
    %v1527 = vadd.f32 %v1374, %v1526
    %v1528 = vpop.f32.mrb[0].mxu0
    %v1529 = vadd.f32 %v1376, %v1528
    %v1530 = vpop.f32.mrb[0].mxu0
    %v1531 = vadd.f32 %v1378, %v1530
    %1532 = vmatprep.mubr.bf16.mxu0 %v957
    %1533 = vmatmul.mubr.bf16.gmra.mrb[0].mxu0 %v774
    %v1534 = vpop.f32.mrb[0].mxu0
    %v1535 = vadd.f32 %v1382, %v1534
    %v1536 = vpop.f32.mrb[0].mxu0
    %v1537 = vadd.f32 %v1384, %v1536
    %v1538 = vpop.f32.mrb[0].mxu0
    %v1539 = vadd.f32 %v1386, %v1538
    %v1540 = vpop.f32.mrb[0].mxu0
    %v1541 = vadd.f32 %v1388, %v1540
    %1542 = vmatprep.mubr.bf16.mxu0 %v960
    %1543 = vmatmul.mubr.bf16.gmra.mrb[0].mxu0 %v782
    %v1544 = vpop.f32.mrb[0].mxu0
    %v1545 = vadd.f32 %v1392, %v1544
    %v1546 = vpop.f32.mrb[0].mxu0
    %v1547 = vadd.f32 %v1394, %v1546
    %v1548 = vpop.f32.mrb[0].mxu0
    %v1549 = vadd.f32 %v1396, %v1548
    %v1550 = vpop.f32.mrb[0].mxu0
    %v1551 = vadd.f32 %v1398, %v1550
    %1552 = vmatprep.mubr.bf16.mxu0 %v963
    %1553 = vmatmul.mubr.bf16.gmra.mrb[0].mxu0 %v790
    %v1554 = vpop.f32.mrb[0].mxu0
    %v1555 = vadd.f32 %v1402, %v1554
    %v1556 = vpop.f32.mrb[0].mxu0
    %v1557 = vadd.f32 %v1404, %v1556
    %v1558 = vpop.f32.mrb[0].mxu0
    %v1559 = vadd.f32 %v1406, %v1558
    %v1560 = vpop.f32.mrb[0].mxu0
    %v1561 = vadd.f32 %v1408, %v1560
    %1562 = vmatprep.mubr.bf16.mxu0 %v966
    %1563 = vmatmul.mubr.bf16.gmra.mrb[0].mxu0 %v798
    %v1564 = vpop.f32.mrb[0].mxu0
    %v1565 = vadd.f32 %v1412, %v1564
    %v1566 = vpop.f32.mrb[0].mxu0
    %v1567 = vadd.f32 %v1414, %v1566
    %v1568 = vpop.f32.mrb[0].mxu0
    %v1569 = vadd.f32 %v1416, %v1568
    %v1570 = vpop.f32.mrb[0].mxu0
    %v1571 = vadd.f32 %v1418, %v1570
    %1572 = vmatprep.mubr.bf16.mxu0 %v969
    %1573 = vmatmul.mubr.bf16.gmra.mrb[0].mxu0 %v806
    %v1574 = vpop.f32.mrb[0].mxu0
    %v1575 = vadd.f32 %v1422, %v1574
    %v1576 = vpop.f32.mrb[0].mxu0
    %v1577 = vadd.f32 %v1424, %v1576
    %v1578 = vpop.f32.mrb[0].mxu0
    %v1579 = vadd.f32 %v1426, %v1578
    %v1580 = vpop.f32.mrb[0].mxu0
    %v1581 = vadd.f32 %v1428, %v1580
    %1582 = vdwg.mxu0
    %vm1583 = vcmask 556032
    %v1584 = vsel %vm1583, %v1467, 0.0
    %v1585 = vadd.f32 %v1465, %v1584
    %1586 = vadd.xlane.f32.xlu0 %v1585
    %v1587 = vpop.xlane.xlu0 %1586
    %v1588 = vsel %vm1583, %v1471, 0.0
    %v1589 = vadd.f32 %v1469, %v1588
    %1590 = vadd.xlane.f32.xlu0 %v1589
    %v1591 = vpop.xlane.xlu0 %1590
    %v1592 = vsel %vm1583, %v1477, 0.0
    %v1593 = vadd.f32 %v1475, %v1592
    %1594 = vadd.xlane.f32.xlu0 %v1593
    %v1595 = vpop.xlane.xlu0 %1594
    %v1596 = vsel %vm1583, %v1481, 0.0
    %v1597 = vadd.f32 %v1479, %v1596
    %1598 = vadd.xlane.f32.xlu0 %v1597
    %v1599 = vpop.xlane.xlu0 %1598
    %v1600 = vsel %vm1583, %v1487, 0.0
    %v1601 = vadd.f32 %v1485, %v1600
    %1602 = vadd.xlane.f32.xlu0 %v1601
    %v1603 = vpop.xlane.xlu0 %1602
    %v1604 = vsel %vm1583, %v1491, 0.0
    %v1605 = vadd.f32 %v1489, %v1604
    %1606 = vadd.xlane.f32.xlu0 %v1605
    %v1607 = vpop.xlane.xlu0 %1606
    %v1608 = vsel %vm1583, %v1497, 0.0
    %v1609 = vadd.f32 %v1495, %v1608
    %1610 = vadd.xlane.f32.xlu0 %v1609
    %v1611 = vpop.xlane.xlu0 %1610
    %v1612 = vsel %vm1583, %v1501, 0.0
    %v1613 = vadd.f32 %v1499, %v1612
    %1614 = vadd.xlane.f32.xlu0 %v1613
    %v1615 = vpop.xlane.xlu0 %1614
    %v1616 = vsel %vm1583, %v1507, 0.0
    %v1617 = vadd.f32 %v1505, %v1616
    %1618 = vadd.xlane.f32.xlu0 %v1617
    %v1619 = vpop.xlane.xlu0 %1618
    %v1620 = vsel %vm1583, %v1511, 0.0
    %v1621 = vadd.f32 %v1509, %v1620
    %1622 = vadd.xlane.f32.xlu0 %v1621
    %v1623 = vpop.xlane.xlu0 %1622
    %v1624 = vsel %vm1583, %v1517, 0.0
    %v1625 = vadd.f32 %v1515, %v1624
    %1626 = vadd.xlane.f32.xlu0 %v1625
    %v1627 = vpop.xlane.xlu0 %1626
    %v1628 = vsel %vm1583, %v1521, 0.0
    %v1629 = vadd.f32 %v1519, %v1628
    %1630 = vadd.xlane.f32.xlu0 %v1629
    %v1631 = vpop.xlane.xlu0 %1630
    %v1632 = vsel %vm1583, %v1527, 0.0
    %v1633 = vadd.f32 %v1525, %v1632
    %1634 = vadd.xlane.f32.xlu0 %v1633
    %v1635 = vpop.xlane.xlu0 %1634
    %v1636 = vsel %vm1583, %v1531, 0.0
    %v1637 = vadd.f32 %v1529, %v1636
    %1638 = vadd.xlane.f32.xlu0 %v1637
    %v1639 = vpop.xlane.xlu0 %1638
    %v1640 = vsel %vm1583, %v1537, 0.0
    %v1641 = vadd.f32 %v1535, %v1640
    %1642 = vadd.xlane.f32.xlu0 %v1641
    %v1643 = vpop.xlane.xlu0 %1642
    %v1644 = vsel %vm1583, %v1541, 0.0
    %v1645 = vadd.f32 %v1539, %v1644
    %1646 = vadd.xlane.f32.xlu0 %v1645
    %v1647 = vpop.xlane.xlu0 %1646
    %v1648 = vsel %vm1583, %v1547, 0.0
    %v1649 = vadd.f32 %v1545, %v1648
    %1650 = vadd.xlane.f32.xlu0 %v1649
    %v1651 = vpop.xlane.xlu0 %1650
    %v1652 = vsel %vm1583, %v1551, 0.0
    %v1653 = vadd.f32 %v1549, %v1652
    %1654 = vadd.xlane.f32.xlu0 %v1653
    %v1655 = vpop.xlane.xlu0 %1654
    %v1656 = vsel %vm1583, %v1557, 0.0
    %v1657 = vadd.f32 %v1555, %v1656
    %1658 = vadd.xlane.f32.xlu0 %v1657
    %v1659 = vpop.xlane.xlu0 %1658
    %v1660 = vsel %vm1583, %v1561, 0.0
    %v1661 = vadd.f32 %v1559, %v1660
    %1662 = vadd.xlane.f32.xlu0 %v1661
    %v1663 = vpop.xlane.xlu0 %1662
    %v1664 = vsel %vm1583, %v1567, 0.0
    %v1665 = vadd.f32 %v1565, %v1664
    %1666 = vadd.xlane.f32.xlu0 %v1665
    %v1667 = vpop.xlane.xlu0 %1666
    %v1668 = vsel %vm1583, %v1571, 0.0
    %v1669 = vadd.f32 %v1569, %v1668
    %1670 = vadd.xlane.f32.xlu0 %v1669
    %v1671 = vpop.xlane.xlu0 %1670
    %v1672 = vsel %vm1583, %v1577, 0.0
    %v1673 = vadd.f32 %v1575, %v1672
    %1674 = vadd.xlane.f32.xlu0 %v1673
    %v1675 = vpop.xlane.xlu0 %1674
    %v1676 = vsel %vm1583, %v1581, 0.0
    %v1677 = vadd.f32 %v1579, %v1676
    %1678 = vadd.xlane.f32.xlu0 %v1677
    %v1679 = vpop.xlane.xlu0 %1678
    %v1680 = vmul.f32 %v1465, %v1465
    %v1681 = vmul.f32 %v1467, %v1467
    %v1682 = vmul.f32 %v1469, %v1469
    %v1683 = vmul.f32 %v1471, %v1471
    %v1684 = vmul.f32 %v1475, %v1475
    %v1685 = vmul.f32 %v1477, %v1477
    %v1686 = vmul.f32 %v1479, %v1479
    %v1687 = vmul.f32 %v1481, %v1481
    %v1688 = vmul.f32 %v1485, %v1485
    %v1689 = vmul.f32 %v1487, %v1487
    %v1690 = vmul.f32 %v1489, %v1489
    %v1691 = vmul.f32 %v1491, %v1491
    %v1692 = vmul.f32 %v1495, %v1495
    %v1693 = vmul.f32 %v1497, %v1497
    %v1694 = vmul.f32 %v1499, %v1499
    %v1695 = vmul.f32 %v1501, %v1501
    %v1696 = vmul.f32 %v1505, %v1505
    %v1697 = vmul.f32 %v1507, %v1507
    %v1698 = vmul.f32 %v1509, %v1509
    %v1699 = vmul.f32 %v1511, %v1511
    %v1700 = vmul.f32 %v1515, %v1515
    %v1701 = vmul.f32 %v1517, %v1517
    %v1702 = vmul.f32 %v1519, %v1519
    %v1703 = vmul.f32 %v1521, %v1521
    %v1704 = vmul.f32 %v1525, %v1525
    %v1705 = vmul.f32 %v1527, %v1527
    %v1706 = vmul.f32 %v1529, %v1529
    %v1707 = vmul.f32 %v1531, %v1531
    %v1708 = vmul.f32 %v1535, %v1535
    %v1709 = vmul.f32 %v1537, %v1537
    %v1710 = vmul.f32 %v1539, %v1539
    %v1711 = vmul.f32 %v1541, %v1541
    %v1712 = vmul.f32 %v1545, %v1545
    %v1713 = vmul.f32 %v1547, %v1547
    %v1714 = vmul.f32 %v1549, %v1549
    %v1715 = vmul.f32 %v1551, %v1551
    %v1716 = vmul.f32 %v1555, %v1555
    %v1717 = vmul.f32 %v1557, %v1557
    %v1718 = vmul.f32 %v1559, %v1559
    %v1719 = vmul.f32 %v1561, %v1561
    %v1720 = vmul.f32 %v1565, %v1565
    %v1721 = vmul.f32 %v1567, %v1567
    %v1722 = vmul.f32 %v1569, %v1569
    %v1723 = vmul.f32 %v1571, %v1571
    %v1724 = vmul.f32 %v1575, %v1575
    %v1725 = vmul.f32 %v1577, %v1577
    %v1726 = vmul.f32 %v1579, %v1579
    %v1727 = vmul.f32 %v1581, %v1581
    %v1728 = vsel %vm1583, %v1681, 0.0
    %v1729 = vadd.f32 %v1680, %v1728
    %1730 = vadd.xlane.f32.xlu0 %v1729
    %v1731 = vpop.xlane.xlu0 %1730
    %v1732 = vsel %vm1583, %v1683, 0.0
    %v1733 = vadd.f32 %v1682, %v1732
    %1734 = vadd.xlane.f32.xlu0 %v1733
    %v1735 = vpop.xlane.xlu0 %1734
    %v1736 = vsel %vm1583, %v1685, 0.0
    %v1737 = vadd.f32 %v1684, %v1736
    %1738 = vadd.xlane.f32.xlu0 %v1737
    %v1739 = vpop.xlane.xlu0 %1738
    %v1740 = vsel %vm1583, %v1687, 0.0
    %v1741 = vadd.f32 %v1686, %v1740
    %1742 = vadd.xlane.f32.xlu0 %v1741
    %v1743 = vpop.xlane.xlu0 %1742
    %v1744 = vsel %vm1583, %v1689, 0.0
    %v1745 = vadd.f32 %v1688, %v1744
    %1746 = vadd.xlane.f32.xlu0 %v1745
    %v1747 = vpop.xlane.xlu0 %1746
    %v1748 = vsel %vm1583, %v1691, 0.0
    %v1749 = vadd.f32 %v1690, %v1748
    %1750 = vadd.xlane.f32.xlu0 %v1749
    %v1751 = vpop.xlane.xlu0 %1750
    %v1752 = vsel %vm1583, %v1693, 0.0
    %v1753 = vadd.f32 %v1692, %v1752
    %1754 = vadd.xlane.f32.xlu0 %v1753
    %v1755 = vpop.xlane.xlu0 %1754
    %v1756 = vsel %vm1583, %v1695, 0.0
    %v1757 = vadd.f32 %v1694, %v1756
    %1758 = vadd.xlane.f32.xlu0 %v1757
    %v1759 = vpop.xlane.xlu0 %1758
    %v1760 = vsel %vm1583, %v1697, 0.0
    %v1761 = vadd.f32 %v1696, %v1760
    %1762 = vadd.xlane.f32.xlu0 %v1761
    %v1763 = vpop.xlane.xlu0 %1762
    %v1764 = vsel %vm1583, %v1699, 0.0
    %v1765 = vadd.f32 %v1698, %v1764
    %1766 = vadd.xlane.f32.xlu0 %v1765
    %v1767 = vpop.xlane.xlu0 %1766
    %v1768 = vsel %vm1583, %v1701, 0.0
    %v1769 = vadd.f32 %v1700, %v1768
    %1770 = vadd.xlane.f32.xlu0 %v1769
    %v1771 = vpop.xlane.xlu0 %1770
    %v1772 = vsel %vm1583, %v1703, 0.0
    %v1773 = vadd.f32 %v1702, %v1772
    %1774 = vadd.xlane.f32.xlu0 %v1773
    %v1775 = vpop.xlane.xlu0 %1774
    %v1776 = vsel %vm1583, %v1705, 0.0
    %v1777 = vadd.f32 %v1704, %v1776
    %1778 = vadd.xlane.f32.xlu0 %v1777
    %v1779 = vpop.xlane.xlu0 %1778
    %v1780 = vsel %vm1583, %v1707, 0.0
    %v1781 = vadd.f32 %v1706, %v1780
    %1782 = vadd.xlane.f32.xlu0 %v1781
    %v1783 = vpop.xlane.xlu0 %1782
    %v1784 = vsel %vm1583, %v1709, 0.0
    %v1785 = vadd.f32 %v1708, %v1784
    %1786 = vadd.xlane.f32.xlu0 %v1785
    %v1787 = vpop.xlane.xlu0 %1786
    %v1788 = vsel %vm1583, %v1711, 0.0
    %v1789 = vadd.f32 %v1710, %v1788
    %1790 = vadd.xlane.f32.xlu0 %v1789
    %v1791 = vpop.xlane.xlu0 %1790
    %v1792 = vsel %vm1583, %v1713, 0.0
    %v1793 = vadd.f32 %v1712, %v1792
    %1794 = vadd.xlane.f32.xlu0 %v1793
    %v1795 = vpop.xlane.xlu0 %1794
    %v1796 = vsel %vm1583, %v1715, 0.0
    %v1797 = vadd.f32 %v1714, %v1796
    %1798 = vadd.xlane.f32.xlu0 %v1797
    %v1799 = vpop.xlane.xlu0 %1798
    %v1800 = vsel %vm1583, %v1717, 0.0
    %v1801 = vadd.f32 %v1716, %v1800
    %1802 = vadd.xlane.f32.xlu0 %v1801
    %v1803 = vpop.xlane.xlu0 %1802
    %v1804 = vsel %vm1583, %v1719, 0.0
    %v1805 = vadd.f32 %v1718, %v1804
    %1806 = vadd.xlane.f32.xlu0 %v1805
    %v1807 = vpop.xlane.xlu0 %1806
    %v1808 = vsel %vm1583, %v1721, 0.0
    %v1809 = vadd.f32 %v1720, %v1808
    %1810 = vadd.xlane.f32.xlu0 %v1809
    %v1811 = vpop.xlane.xlu0 %1810
    %v1812 = vsel %vm1583, %v1723, 0.0
    %v1813 = vadd.f32 %v1722, %v1812
    %1814 = vadd.xlane.f32.xlu0 %v1813
    %v1815 = vpop.xlane.xlu0 %1814
    %v1816 = vsel %vm1583, %v1725, 0.0
    %v1817 = vadd.f32 %v1724, %v1816
    %1818 = vadd.xlane.f32.xlu0 %v1817
    %v1819 = vpop.xlane.xlu0 %1818
    %v1820 = vsel %vm1583, %v1727, 0.0
    %v1821 = vadd.f32 %v1726, %v1820
    %1822 = vadd.xlane.f32.xlu0 %v1821
    %v1823 = vpop.xlane.xlu0 %1822
    %v1824 = vrcp.pop 196.0
    %v1825 = vmul.f32 %v1587, %v1824
    %v1826 = vmul.f32 %v1591, %v1824
    %v1827 = vmul.f32 %v1595, %v1824
    %v1828 = vmul.f32 %v1599, %v1824
    %v1829 = vmul.f32 %v1603, %v1824
    %v1830 = vmul.f32 %v1607, %v1824
    %v1831 = vmul.f32 %v1611, %v1824
    %v1832 = vmul.f32 %v1615, %v1824
    %v1833 = vmul.f32 %v1619, %v1824
    %v1834 = vmul.f32 %v1623, %v1824
    %v1835 = vmul.f32 %v1627, %v1824
    %v1836 = vmul.f32 %v1631, %v1824
    %v1837 = vmul.f32 %v1635, %v1824
    %v1838 = vmul.f32 %v1639, %v1824
    %v1839 = vmul.f32 %v1643, %v1824
    %v1840 = vmul.f32 %v1647, %v1824
    %v1841 = vmul.f32 %v1651, %v1824
    %v1842 = vmul.f32 %v1655, %v1824
    %v1843 = vmul.f32 %v1659, %v1824
    %v1844 = vmul.f32 %v1663, %v1824
    %v1845 = vmul.f32 %v1667, %v1824
    %v1846 = vmul.f32 %v1671, %v1824
    %v1847 = vmul.f32 %v1675, %v1824
    %v1848 = vmul.f32 %v1679, %v1824
    %v1849 = vmul.f32 %v1731, %v1824
    %v1850 = vmul.f32 %v1735, %v1824
    %v1851 = vmul.f32 %v1739, %v1824
    %v1852 = vmul.f32 %v1743, %v1824
    %v1853 = vmul.f32 %v1747, %v1824
    %v1854 = vmul.f32 %v1751, %v1824
    %v1855 = vmul.f32 %v1755, %v1824
    %v1856 = vmul.f32 %v1759, %v1824
    %v1857 = vmul.f32 %v1763, %v1824
    %v1858 = vmul.f32 %v1767, %v1824
    %v1859 = vmul.f32 %v1771, %v1824
    %v1860 = vmul.f32 %v1775, %v1824
    %v1861 = vmul.f32 %v1779, %v1824
    %v1862 = vmul.f32 %v1783, %v1824
    %v1863 = vmul.f32 %v1787, %v1824
    %v1864 = vmul.f32 %v1791, %v1824
    %v1865 = vmul.f32 %v1795, %v1824
    %v1866 = vmul.f32 %v1799, %v1824
    %v1867 = vmul.f32 %v1803, %v1824
    %v1868 = vmul.f32 %v1807, %v1824
    %v1869 = vmul.f32 %v1811, %v1824
    %v1870 = vmul.f32 %v1815, %v1824
    %v1871 = vmul.f32 %v1819, %v1824
    %v1872 = vmul.f32 %v1823, %v1824
    %v1873 = vmul.f32 %v1825, %v1825
    %v1874 = vmul.f32 %v1826, %v1826
    %v1875 = vmul.f32 %v1827, %v1827
    %v1876 = vmul.f32 %v1828, %v1828
    %v1877 = vmul.f32 %v1829, %v1829
    %v1878 = vmul.f32 %v1830, %v1830
    %v1879 = vmul.f32 %v1831, %v1831
    %v1880 = vmul.f32 %v1832, %v1832
    %v1881 = vmul.f32 %v1833, %v1833
    %v1882 = vmul.f32 %v1834, %v1834
    %v1883 = vmul.f32 %v1835, %v1835
    %v1884 = vmul.f32 %v1836, %v1836
    %v1885 = vmul.f32 %v1837, %v1837
    %v1886 = vmul.f32 %v1838, %v1838
    %v1887 = vmul.f32 %v1839, %v1839
    %v1888 = vmul.f32 %v1840, %v1840
    %v1889 = vmul.f32 %v1841, %v1841
    %v1890 = vmul.f32 %v1842, %v1842
    %v1891 = vmul.f32 %v1843, %v1843
    %v1892 = vmul.f32 %v1844, %v1844
    %v1893 = vmul.f32 %v1845, %v1845
    %v1894 = vmul.f32 %v1846, %v1846
    %v1895 = vmul.f32 %v1847, %v1847
    %v1896 = vmul.f32 %v1848, %v1848
    %v1897 = vsub.f32 %v1849, %v1873
    %v1898 = vsub.f32 %v1850, %v1874
    %v1899 = vsub.f32 %v1851, %v1875
    %v1900 = vsub.f32 %v1852, %v1876
    %v1901 = vsub.f32 %v1853, %v1877
    %v1902 = vsub.f32 %v1854, %v1878
    %v1903 = vsub.f32 %v1855, %v1879
    %v1904 = vsub.f32 %v1856, %v1880
    %v1905 = vsub.f32 %v1857, %v1881
    %v1906 = vsub.f32 %v1858, %v1882
    %v1907 = vsub.f32 %v1859, %v1883
    %v1908 = vsub.f32 %v1860, %v1884
    %v1909 = vsub.f32 %v1861, %v1885
    %v1910 = vsub.f32 %v1862, %v1886
    %v1911 = vsub.f32 %v1863, %v1887
    %v1912 = vsub.f32 %v1864, %v1888
    %v1913 = vsub.f32 %v1865, %v1889
    %v1914 = vsub.f32 %v1866, %v1890
    %v1915 = vsub.f32 %v1867, %v1891
    %v1916 = vsub.f32 %v1868, %v1892
    %v1917 = vsub.f32 %v1869, %v1893
    %v1918 = vsub.f32 %v1870, %v1894
    %v1919 = vsub.f32 %v1871, %v1895
    %v1920 = vsub.f32 %v1872, %v1896
    %v1921 = vmax.f32 %v1897, 0.0
    %v1922 = vmax.f32 %v1898, 0.0
    %v1923 = vmax.f32 %v1899, 0.0
    %v1924 = vmax.f32 %v1900, 0.0
    %v1925 = vmax.f32 %v1901, 0.0
    %v1926 = vmax.f32 %v1902, 0.0
    %v1927 = vmax.f32 %v1903, 0.0
    %v1928 = vmax.f32 %v1904, 0.0
    %v1929 = vmax.f32 %v1905, 0.0
    %v1930 = vmax.f32 %v1906, 0.0
    %v1931 = vmax.f32 %v1907, 0.0
    %v1932 = vmax.f32 %v1908, 0.0
    %v1933 = vmax.f32 %v1909, 0.0
    %v1934 = vmax.f32 %v1910, 0.0
    %v1935 = vmax.f32 %v1911, 0.0
    %v1936 = vmax.f32 %v1912, 0.0
    %v1937 = vmax.f32 %v1913, 0.0
    %v1938 = vmax.f32 %v1914, 0.0
    %v1939 = vmax.f32 %v1915, 0.0
    %v1940 = vmax.f32 %v1916, 0.0
    %v1941 = vmax.f32 %v1917, 0.0
    %v1942 = vmax.f32 %v1918, 0.0
    %v1943 = vmax.f32 %v1919, 0.0
    %v1944 = vmax.f32 %v1920, 0.0
    %v1945 = vadd.f32 %v1921, 1e-05
    %v1946 = vadd.f32 %v1922, 1e-05
    %v1947 = vadd.f32 %v1923, 1e-05
    %v1948 = vadd.f32 %v1924, 1e-05
    %v1949 = vadd.f32 %v1925, 1e-05
    %v1950 = vadd.f32 %v1926, 1e-05
    %v1951 = vadd.f32 %v1927, 1e-05
    %v1952 = vadd.f32 %v1928, 1e-05
    %v1953 = vadd.f32 %v1929, 1e-05
    %v1954 = vadd.f32 %v1930, 1e-05
    %v1955 = vadd.f32 %v1931, 1e-05
    %v1956 = vadd.f32 %v1932, 1e-05
    %v1957 = vadd.f32 %v1933, 1e-05
    %v1958 = vadd.f32 %v1934, 1e-05
    %v1959 = vadd.f32 %v1935, 1e-05
    %v1960 = vadd.f32 %v1936, 1e-05
    %v1961 = vadd.f32 %v1937, 1e-05
    %v1962 = vadd.f32 %v1938, 1e-05
    %v1963 = vadd.f32 %v1939, 1e-05
    %v1964 = vadd.f32 %v1940, 1e-05
    %v1965 = vadd.f32 %v1941, 1e-05
    %v1966 = vadd.f32 %v1942, 1e-05
    %v1967 = vadd.f32 %v1943, 1e-05
    %v1968 = vadd.f32 %v1944, 1e-05
    %v1969 = vrsqrt.pop %v1945
    %v1970 = vrsqrt.pop %v1946
    %v1971 = vrsqrt.pop %v1947
    %v1972 = vrsqrt.pop %v1948
    %v1973 = vrsqrt.pop %v1949
    %v1974 = vrsqrt.pop %v1950
    %v1975 = vrsqrt.pop %v1951
    %v1976 = vrsqrt.pop %v1952
    %v1977 = vrsqrt.pop %v1953
    %v1978 = vrsqrt.pop %v1954
    %v1979 = vrsqrt.pop %v1955
    %v1980 = vrsqrt.pop %v1956
    %v1981 = vrsqrt.pop %v1957
    %v1982 = vrsqrt.pop %v1958
    %v1983 = vrsqrt.pop %v1959
    %v1984 = vrsqrt.pop %v1960
    %v1985 = vrsqrt.pop %v1961
    %v1986 = vrsqrt.pop %v1962
    %v1987 = vrsqrt.pop %v1963
    %v1988 = vrsqrt.pop %v1964
    %v1989 = vrsqrt.pop %v1965
    %v1990 = vrsqrt.pop %v1966
    %v1991 = vrsqrt.pop %v1967
    %v1992 = vrsqrt.pop %v1968
    %v1993 = vld [vmem:[%s2] sm:$0xff]
    %v1994 = vld [vmem:[%s2 + $0x8] sm:$0xff]
    %v1995 = vld [vmem:[%s2 + $0x10] sm:$0xff]
    %v1996 = vld [vmem:[%s2 + $0x18] sm:$0xff]
    %v1997 = vld [vmem:[%s2 + $0x20] sm:$0xff]
    %v1998 = vld [vmem:[%s2 + $0x28] sm:$0xff]
    %v1999 = vld [vmem:[%s2 + $0x30] sm:$0xff]
    %v2000 = vld [vmem:[%s2 + $0x38] sm:$0xff]
    %v2001 = vld [vmem:[%s2 + $0x40] sm:$0xff]
    %v2002 = vld [vmem:[%s2 + $0x48] sm:$0xff]
    %v2003 = vld [vmem:[%s2 + $0x50] sm:$0xff]
    %v2004 = vld [vmem:[%s2 + $0x58] sm:$0xff]
    %v2005 = vld [vmem:[%s2 + $0x60] sm:$0xff]
    %v2006 = vld [vmem:[%s2 + $0x68] sm:$0xff]
    %v2007 = vld [vmem:[%s2 + $0x70] sm:$0xff]
    %v2008 = vld [vmem:[%s2 + $0x78] sm:$0xff]
    %v2009 = vld [vmem:[%s2 + $0x80] sm:$0xff]
    %v2010 = vld [vmem:[%s2 + $0x88] sm:$0xff]
    %v2011 = vld [vmem:[%s2 + $0x90] sm:$0xff]
    %v2012 = vld [vmem:[%s2 + $0x98] sm:$0xff]
    %v2013 = vld [vmem:[%s2 + $0xa0] sm:$0xff]
    %v2014 = vld [vmem:[%s2 + $0xa8] sm:$0xff]
    %v2015 = vld [vmem:[%s2 + $0xb0] sm:$0xff]
    %v2016 = vld [vmem:[%s2 + $0xb8] sm:$0xff]
    %v2017 = vmul.f32 %v1993, %v1969
    %v2018 = vmul.f32 %v1994, %v1970
    %v2019 = vmul.f32 %v1995, %v1971
    %v2020 = vmul.f32 %v1996, %v1972
    %v2021 = vmul.f32 %v1997, %v1973
    %v2022 = vmul.f32 %v1998, %v1974
    %v2023 = vmul.f32 %v1999, %v1975
    %v2024 = vmul.f32 %v2000, %v1976
    %v2025 = vmul.f32 %v2001, %v1977
    %v2026 = vmul.f32 %v2002, %v1978
    %v2027 = vmul.f32 %v2003, %v1979
    %v2028 = vmul.f32 %v2004, %v1980
    %v2029 = vmul.f32 %v2005, %v1981
    %v2030 = vmul.f32 %v2006, %v1982
    %v2031 = vmul.f32 %v2007, %v1983
    %v2032 = vmul.f32 %v2008, %v1984
    %v2033 = vmul.f32 %v2009, %v1985
    %v2034 = vmul.f32 %v2010, %v1986
    %v2035 = vmul.f32 %v2011, %v1987
    %v2036 = vmul.f32 %v2012, %v1988
    %v2037 = vmul.f32 %v2013, %v1989
    %v2038 = vmul.f32 %v2014, %v1990
    %v2039 = vmul.f32 %v2015, %v1991
    %v2040 = vmul.f32 %v2016, %v1992
    %v2041 = vmul.f32 %v1825, %v2017
    %v2042 = vmul.f32 %v1826, %v2018
    %v2043 = vmul.f32 %v1827, %v2019
    %v2044 = vmul.f32 %v1828, %v2020
    %v2045 = vmul.f32 %v1829, %v2021
    %v2046 = vmul.f32 %v1830, %v2022
    %v2047 = vmul.f32 %v1831, %v2023
    %v2048 = vmul.f32 %v1832, %v2024
    %v2049 = vmul.f32 %v1833, %v2025
    %v2050 = vmul.f32 %v1834, %v2026
    %v2051 = vmul.f32 %v1835, %v2027
    %v2052 = vmul.f32 %v1836, %v2028
    %v2053 = vmul.f32 %v1837, %v2029
    %v2054 = vmul.f32 %v1838, %v2030
    %v2055 = vmul.f32 %v1839, %v2031
    %v2056 = vmul.f32 %v1840, %v2032
    %v2057 = vmul.f32 %v1841, %v2033
    %v2058 = vmul.f32 %v1842, %v2034
    %v2059 = vmul.f32 %v1843, %v2035
    %v2060 = vmul.f32 %v1844, %v2036
    %v2061 = vmul.f32 %v1845, %v2037
    %v2062 = vmul.f32 %v1846, %v2038
    %v2063 = vmul.f32 %v1847, %v2039
    %v2064 = vmul.f32 %v1848, %v2040
    %2089 = vrot.lane.b32.xlu0 %v2041, 1
    %v2090 = vpop.permute.xlu0 %2089
    %2091 = vrot.lane.b32.xlu0 %v2042, 1
    %v2092 = vpop.permute.xlu0 %2091
    %2093 = vrot.lane.b32.xlu0 %v2043, 1
    %v2094 = vpop.permute.xlu0 %2093
    %2095 = vrot.lane.b32.xlu0 %v2044, 1
    %v2096 = vpop.permute.xlu0 %2095
    %2097 = vrot.lane.b32.xlu0 %v2045, 1
    %v2098 = vpop.permute.xlu0 %2097
    %2099 = vrot.lane.b32.xlu0 %v2046, 1
    %v2100 = vpop.permute.xlu0 %2099
    %2101 = vrot.lane.b32.xlu0 %v2047, 1
    %v2102 = vpop.permute.xlu0 %2101
    %2103 = vrot.lane.b32.xlu0 %v2048, 1
    %v2104 = vpop.permute.xlu0 %2103
    %2105 = vrot.lane.b32.xlu0 %v2049, 1
    %v2106 = vpop.permute.xlu0 %2105
    %2107 = vrot.lane.b32.xlu0 %v2050, 1
    %v2108 = vpop.permute.xlu0 %2107
    %2109 = vrot.lane.b32.xlu0 %v2051, 1
    %v2110 = vpop.permute.xlu0 %2109
    %2111 = vrot.lane.b32.xlu0 %v2052, 1
    %v2112 = vpop.permute.xlu0 %2111
    %2113 = vrot.lane.b32.xlu0 %v2053, 1
    %v2114 = vpop.permute.xlu0 %2113
    %2115 = vrot.lane.b32.xlu0 %v2054, 1
    %v2116 = vpop.permute.xlu0 %2115
    %2117 = vrot.lane.b32.xlu0 %v2055, 1
    %v2118 = vpop.permute.xlu0 %2117
    %2119 = vrot.lane.b32.xlu0 %v2056, 1
    %v2120 = vpop.permute.xlu0 %2119
    %2121 = vrot.lane.b32.xlu0 %v2057, 1
    %v2122 = vpop.permute.xlu0 %2121
    %2123 = vrot.lane.b32.xlu0 %v2058, 1
    %v2124 = vpop.permute.xlu0 %2123
    %2125 = vrot.lane.b32.xlu0 %v2059, 1
    %v2126 = vpop.permute.xlu0 %2125
    %2127 = vrot.lane.b32.xlu0 %v2060, 1
    %v2128 = vpop.permute.xlu0 %2127
    %2129 = vrot.lane.b32.xlu0 %v2061, 1
    %v2130 = vpop.permute.xlu0 %2129
    %2131 = vrot.lane.b32.xlu0 %v2062, 1
    %v2132 = vpop.permute.xlu0 %2131
    %2133 = vrot.lane.b32.xlu0 %v2063, 1
    %v2134 = vpop.permute.xlu0 %2133
    %2135 = vrot.lane.b32.xlu0 %v2064, 1
    %v2136 = vpop.permute.xlu0 %2135
    %v2161 = vsub.f32 %v1993, %v2090
    %v2162 = vsub.f32 %v1994, %v2092
    %v2163 = vsub.f32 %v1995, %v2094
    %v2164 = vsub.f32 %v1996, %v2096
    %v2165 = vsub.f32 %v1997, %v2098
    %v2166 = vsub.f32 %v1998, %v2100
    %v2167 = vsub.f32 %v1999, %v2102
    %v2168 = vsub.f32 %v2000, %v2104
    %v2169 = vsub.f32 %v2001, %v2106
    %v2170 = vsub.f32 %v2002, %v2108
    %v2171 = vsub.f32 %v2003, %v2110
    %v2172 = vsub.f32 %v2004, %v2112
    %v2173 = vsub.f32 %v2005, %v2114
    %v2174 = vsub.f32 %v2006, %v2116
    %v2175 = vsub.f32 %v2007, %v2118
    %v2176 = vsub.f32 %v2008, %v2120
    %v2177 = vsub.f32 %v2009, %v2122
    %v2178 = vsub.f32 %v2010, %v2124
    %v2179 = vsub.f32 %v2011, %v2126
    %v2180 = vsub.f32 %v2012, %v2128
    %v2181 = vsub.f32 %v2013, %v2130
    %v2182 = vsub.f32 %v2014, %v2132
    %v2183 = vsub.f32 %v2015, %v2134
    %v2184 = vsub.f32 %v2016, %v2136
    %2186 = vset.pattern.permute.xlu0 0
    %2187 = vperm.xlu0 %2186, %v2017
    %v2188 = vpop.permute.xlu0 %2187
    %2191 = vset.pattern.permute.xlu0 0
    %2192 = vperm.xlu0 %2191, %v2018
    %v2193 = vpop.permute.xlu0 %2192
    %2196 = vset.pattern.permute.xlu0 0
    %2197 = vperm.xlu0 %2196, %v2019
    %v2198 = vpop.permute.xlu0 %2197
    %2201 = vset.pattern.permute.xlu0 0
    %2202 = vperm.xlu0 %2201, %v2020
    %v2203 = vpop.permute.xlu0 %2202
    %2206 = vset.pattern.permute.xlu0 0
    %2207 = vperm.xlu0 %2206, %v2021
    %v2208 = vpop.permute.xlu0 %2207
    %2211 = vset.pattern.permute.xlu0 0
    %2212 = vperm.xlu0 %2211, %v2022
    %v2213 = vpop.permute.xlu0 %2212
    %2216 = vset.pattern.permute.xlu0 0
    %2217 = vperm.xlu0 %2216, %v2023
    %v2218 = vpop.permute.xlu0 %2217
    %2221 = vset.pattern.permute.xlu0 0
    %2222 = vperm.xlu0 %2221, %v2024
    %v2223 = vpop.permute.xlu0 %2222
    %2226 = vset.pattern.permute.xlu0 0
    %2227 = vperm.xlu0 %2226, %v2025
    %v2228 = vpop.permute.xlu0 %2227
    %2231 = vset.pattern.permute.xlu0 0
    %2232 = vperm.xlu0 %2231, %v2026
    %v2233 = vpop.permute.xlu0 %2232
    %2236 = vset.pattern.permute.xlu0 0
    %2237 = vperm.xlu0 %2236, %v2027
    %v2238 = vpop.permute.xlu0 %2237
    %2241 = vset.pattern.permute.xlu0 0
    %2242 = vperm.xlu0 %2241, %v2028
    %v2243 = vpop.permute.xlu0 %2242
    %2246 = vset.pattern.permute.xlu0 0
    %2247 = vperm.xlu0 %2246, %v2029
    %v2248 = vpop.permute.xlu0 %2247
    %2251 = vset.pattern.permute.xlu0 0
    %2252 = vperm.xlu0 %2251, %v2030
    %v2253 = vpop.permute.xlu0 %2252
    %2256 = vset.pattern.permute.xlu0 0
    %2257 = vperm.xlu0 %2256, %v2031
    %v2258 = vpop.permute.xlu0 %2257
    %2261 = vset.pattern.permute.xlu0 0
    %2262 = vperm.xlu0 %2261, %v2032
    %v2263 = vpop.permute.xlu0 %2262
    %2266 = vset.pattern.permute.xlu0 0
    %2267 = vperm.xlu0 %2266, %v2033
    %v2268 = vpop.permute.xlu0 %2267
    %2271 = vset.pattern.permute.xlu0 0
    %2272 = vperm.xlu0 %2271, %v2034
    %v2273 = vpop.permute.xlu0 %2272
    %2276 = vset.pattern.permute.xlu0 0
    %2277 = vperm.xlu0 %2276, %v2035
    %v2278 = vpop.permute.xlu0 %2277
    %2281 = vset.pattern.permute.xlu0 0
    %2282 = vperm.xlu0 %2281, %v2036
    %v2283 = vpop.permute.xlu0 %2282
    %2286 = vset.pattern.permute.xlu0 0
    %2287 = vperm.xlu0 %2286, %v2037
    %v2288 = vpop.permute.xlu0 %2287
    %2291 = vset.pattern.permute.xlu0 0
    %2292 = vperm.xlu0 %2291, %v2038
    %v2293 = vpop.permute.xlu0 %2292
    %2296 = vset.pattern.permute.xlu0 0
    %2297 = vperm.xlu0 %2296, %v2039
    %v2298 = vpop.permute.xlu0 %2297
    %2301 = vset.pattern.permute.xlu0 0
    %2302 = vperm.xlu0 %2301, %v2040
    %v2303 = vpop.permute.xlu0 %2302
    %v2305 = vmul.f32 %v1465, %v2188
    %v2306 = vmul.f32 %v1467, %v2188
    %v2307 = vmul.f32 %v1469, %v2193
    %v2308 = vmul.f32 %v1471, %v2193
    %v2309 = vmul.f32 %v1475, %v2198
    %v2310 = vmul.f32 %v1477, %v2198
    %v2311 = vmul.f32 %v1479, %v2203
    %v2312 = vmul.f32 %v1481, %v2203
    %v2313 = vmul.f32 %v1485, %v2208
    %v2314 = vmul.f32 %v1487, %v2208
    %v2315 = vmul.f32 %v1489, %v2213
    %v2316 = vmul.f32 %v1491, %v2213
    %v2317 = vmul.f32 %v1495, %v2218
    %v2318 = vmul.f32 %v1497, %v2218
    %v2319 = vmul.f32 %v1499, %v2223
    %v2320 = vmul.f32 %v1501, %v2223
    %v2321 = vmul.f32 %v1505, %v2228
    %v2322 = vmul.f32 %v1507, %v2228
    %v2323 = vmul.f32 %v1509, %v2233
    %v2324 = vmul.f32 %v1511, %v2233
    %v2325 = vmul.f32 %v1515, %v2238
    %v2326 = vmul.f32 %v1517, %v2238
    %v2327 = vmul.f32 %v1519, %v2243
    %v2328 = vmul.f32 %v1521, %v2243
    %v2329 = vmul.f32 %v1525, %v2248
    %v2330 = vmul.f32 %v1527, %v2248
    %v2331 = vmul.f32 %v1529, %v2253
    %v2332 = vmul.f32 %v1531, %v2253
    %v2333 = vmul.f32 %v1535, %v2258
    %v2334 = vmul.f32 %v1537, %v2258
    %v2335 = vmul.f32 %v1539, %v2263
    %v2336 = vmul.f32 %v1541, %v2263
    %v2337 = vmul.f32 %v1545, %v2268
    %v2338 = vmul.f32 %v1547, %v2268
    %v2339 = vmul.f32 %v1549, %v2273
    %v2340 = vmul.f32 %v1551, %v2273
    %v2341 = vmul.f32 %v1555, %v2278
    %v2342 = vmul.f32 %v1557, %v2278
    %v2343 = vmul.f32 %v1559, %v2283
    %v2344 = vmul.f32 %v1561, %v2283
    %v2345 = vmul.f32 %v1565, %v2288
    %v2346 = vmul.f32 %v1567, %v2288
    %v2347 = vmul.f32 %v1569, %v2293
    %v2348 = vmul.f32 %v1571, %v2293
    %v2349 = vmul.f32 %v1575, %v2298
    %v2350 = vmul.f32 %v1577, %v2298
    %v2351 = vmul.f32 %v1579, %v2303
    %v2352 = vmul.f32 %v1581, %v2303
    %2354 = vset.pattern.permute.xlu0 1
    %2355 = vperm.xlu0 %2354, %v2161
    %v2356 = vpop.permute.xlu0 %2355
    %2359 = vset.pattern.permute.xlu0 1
    %2360 = vperm.xlu0 %2359, %v2162
    %v2361 = vpop.permute.xlu0 %2360
    %2364 = vset.pattern.permute.xlu0 1
    %2365 = vperm.xlu0 %2364, %v2163
    %v2366 = vpop.permute.xlu0 %2365
    %2369 = vset.pattern.permute.xlu0 1
    %2370 = vperm.xlu0 %2369, %v2164
    %v2371 = vpop.permute.xlu0 %2370
    %2374 = vset.pattern.permute.xlu0 1
    %2375 = vperm.xlu0 %2374, %v2165
    %v2376 = vpop.permute.xlu0 %2375
    %2379 = vset.pattern.permute.xlu0 1
    %2380 = vperm.xlu0 %2379, %v2166
    %v2381 = vpop.permute.xlu0 %2380
    %2384 = vset.pattern.permute.xlu0 1
    %2385 = vperm.xlu0 %2384, %v2167
    %v2386 = vpop.permute.xlu0 %2385
    %2389 = vset.pattern.permute.xlu0 1
    %2390 = vperm.xlu0 %2389, %v2168
    %v2391 = vpop.permute.xlu0 %2390
    %2394 = vset.pattern.permute.xlu0 1
    %2395 = vperm.xlu0 %2394, %v2169
    %v2396 = vpop.permute.xlu0 %2395
    %2399 = vset.pattern.permute.xlu0 1
    %2400 = vperm.xlu0 %2399, %v2170
    %v2401 = vpop.permute.xlu0 %2400
    %2404 = vset.pattern.permute.xlu0 1
    %2405 = vperm.xlu0 %2404, %v2171
    %v2406 = vpop.permute.xlu0 %2405
    %2409 = vset.pattern.permute.xlu0 1
    %2410 = vperm.xlu0 %2409, %v2172
    %v2411 = vpop.permute.xlu0 %2410
    %2414 = vset.pattern.permute.xlu0 1
    %2415 = vperm.xlu0 %2414, %v2173
    %v2416 = vpop.permute.xlu0 %2415
    %2419 = vset.pattern.permute.xlu0 1
    %2420 = vperm.xlu0 %2419, %v2174
    %v2421 = vpop.permute.xlu0 %2420
    %2424 = vset.pattern.permute.xlu0 1
    %2425 = vperm.xlu0 %2424, %v2175
    %v2426 = vpop.permute.xlu0 %2425
    %2429 = vset.pattern.permute.xlu0 1
    %2430 = vperm.xlu0 %2429, %v2176
    %v2431 = vpop.permute.xlu0 %2430
    %2434 = vset.pattern.permute.xlu0 1
    %2435 = vperm.xlu0 %2434, %v2177
    %v2436 = vpop.permute.xlu0 %2435
    %2439 = vset.pattern.permute.xlu0 1
    %2440 = vperm.xlu0 %2439, %v2178
    %v2441 = vpop.permute.xlu0 %2440
    %2444 = vset.pattern.permute.xlu0 1
    %2445 = vperm.xlu0 %2444, %v2179
    %v2446 = vpop.permute.xlu0 %2445
    %2449 = vset.pattern.permute.xlu0 1
    %2450 = vperm.xlu0 %2449, %v2180
    %v2451 = vpop.permute.xlu0 %2450
    %2454 = vset.pattern.permute.xlu0 1
    %2455 = vperm.xlu0 %2454, %v2181
    %v2456 = vpop.permute.xlu0 %2455
    %2459 = vset.pattern.permute.xlu0 1
    %2460 = vperm.xlu0 %2459, %v2182
    %v2461 = vpop.permute.xlu0 %2460
    %2464 = vset.pattern.permute.xlu0 1
    %2465 = vperm.xlu0 %2464, %v2183
    %v2466 = vpop.permute.xlu0 %2465
    %2469 = vset.pattern.permute.xlu0 1
    %2470 = vperm.xlu0 %2469, %v2184
    %v2471 = vpop.permute.xlu0 %2470
    %v2473 = vadd.f32 %v2305, %v2356
    %v2474 = vadd.f32 %v2306, %v2356
    %v2475 = vadd.f32 %v2307, %v2361
    %v2476 = vadd.f32 %v2308, %v2361
    %v2477 = vadd.f32 %v2309, %v2366
    %v2478 = vadd.f32 %v2310, %v2366
    %v2479 = vadd.f32 %v2311, %v2371
    %v2480 = vadd.f32 %v2312, %v2371
    %v2481 = vadd.f32 %v2313, %v2376
    %v2482 = vadd.f32 %v2314, %v2376
    %v2483 = vadd.f32 %v2315, %v2381
    %v2484 = vadd.f32 %v2316, %v2381
    %v2485 = vadd.f32 %v2317, %v2386
    %v2486 = vadd.f32 %v2318, %v2386
    %v2487 = vadd.f32 %v2319, %v2391
    %v2488 = vadd.f32 %v2320, %v2391
    %v2489 = vadd.f32 %v2321, %v2396
    %v2490 = vadd.f32 %v2322, %v2396
    %v2491 = vadd.f32 %v2323, %v2401
    %v2492 = vadd.f32 %v2324, %v2401
    %v2493 = vadd.f32 %v2325, %v2406
    %v2494 = vadd.f32 %v2326, %v2406
    %v2495 = vadd.f32 %v2327, %v2411
    %v2496 = vadd.f32 %v2328, %v2411
    %v2497 = vadd.f32 %v2329, %v2416
    %v2498 = vadd.f32 %v2330, %v2416
    %v2499 = vadd.f32 %v2331, %v2421
    %v2500 = vadd.f32 %v2332, %v2421
    %v2501 = vadd.f32 %v2333, %v2426
    %v2502 = vadd.f32 %v2334, %v2426
    %v2503 = vadd.f32 %v2335, %v2431
    %v2504 = vadd.f32 %v2336, %v2431
    %v2505 = vadd.f32 %v2337, %v2436
    %v2506 = vadd.f32 %v2338, %v2436
    %v2507 = vadd.f32 %v2339, %v2441
    %v2508 = vadd.f32 %v2340, %v2441
    %v2509 = vadd.f32 %v2341, %v2446
    %v2510 = vadd.f32 %v2342, %v2446
    %v2511 = vadd.f32 %v2343, %v2451
    %v2512 = vadd.f32 %v2344, %v2451
    %v2513 = vadd.f32 %v2345, %v2456
    %v2514 = vadd.f32 %v2346, %v2456
    %v2515 = vadd.f32 %v2347, %v2461
    %v2516 = vadd.f32 %v2348, %v2461
    %v2517 = vadd.f32 %v2349, %v2466
    %v2518 = vadd.f32 %v2350, %v2466
    %v2519 = vadd.f32 %v2351, %v2471
    %v2520 = vadd.f32 %v2352, %v2471
    %v2521 = vmax.f32 %v2473, 0.0
    %v2522 = vmax.f32 %v2474, 0.0
    %v2523 = vmax.f32 %v2475, 0.0
    %v2524 = vmax.f32 %v2476, 0.0
    %v2525 = vmax.f32 %v2477, 0.0
    %v2526 = vmax.f32 %v2478, 0.0
    %v2527 = vmax.f32 %v2479, 0.0
    %v2528 = vmax.f32 %v2480, 0.0
    %v2529 = vmax.f32 %v2481, 0.0
    %v2530 = vmax.f32 %v2482, 0.0
    %v2531 = vmax.f32 %v2483, 0.0
    %v2532 = vmax.f32 %v2484, 0.0
    %v2533 = vmax.f32 %v2485, 0.0
    %v2534 = vmax.f32 %v2486, 0.0
    %v2535 = vmax.f32 %v2487, 0.0
    %v2536 = vmax.f32 %v2488, 0.0
    %v2537 = vmax.f32 %v2489, 0.0
    %v2538 = vmax.f32 %v2490, 0.0
    %v2539 = vmax.f32 %v2491, 0.0
    %v2540 = vmax.f32 %v2492, 0.0
    %v2541 = vmax.f32 %v2493, 0.0
    %v2542 = vmax.f32 %v2494, 0.0
    %v2543 = vmax.f32 %v2495, 0.0
    %v2544 = vmax.f32 %v2496, 0.0
    %v2545 = vmax.f32 %v2497, 0.0
    %v2546 = vmax.f32 %v2498, 0.0
    %v2547 = vmax.f32 %v2499, 0.0
    %v2548 = vmax.f32 %v2500, 0.0
    %v2549 = vmax.f32 %v2501, 0.0
    %v2550 = vmax.f32 %v2502, 0.0
    %v2551 = vmax.f32 %v2503, 0.0
    %v2552 = vmax.f32 %v2504, 0.0
    %v2553 = vmax.f32 %v2505, 0.0
    %v2554 = vmax.f32 %v2506, 0.0
    %v2555 = vmax.f32 %v2507, 0.0
    %v2556 = vmax.f32 %v2508, 0.0
    %v2557 = vmax.f32 %v2509, 0.0
    %v2558 = vmax.f32 %v2510, 0.0
    %v2559 = vmax.f32 %v2511, 0.0
    %v2560 = vmax.f32 %v2512, 0.0
    %v2561 = vmax.f32 %v2513, 0.0
    %v2562 = vmax.f32 %v2514, 0.0
    %v2563 = vmax.f32 %v2515, 0.0
    %v2564 = vmax.f32 %v2516, 0.0
    %v2565 = vmax.f32 %v2517, 0.0
    %v2566 = vmax.f32 %v2518, 0.0
    %v2567 = vmax.f32 %v2519, 0.0
    %v2568 = vmax.f32 %v2520, 0.0
    %2569 = vst [vmem:[#allocation2] sm:$0xff] %v2521
    %2570 = vst.msk [vmem:[#allocation2 + $0x8] sm:$0xff] %vm1583, %v2522
    %2571 = vst [vmem:[#allocation2 + $0x10] sm:$0xff] %v2523
    %2572 = vst.msk [vmem:[#allocation2 + $0x18] sm:$0xff] %vm1583, %v2524
    %2573 = vst [vmem:[#allocation2 + $0x20] sm:$0xff] %v2525
    %2574 = vst.msk [vmem:[#allocation2 + $0x28] sm:$0xff] %vm1583, %v2526
    %2575 = vst [vmem:[#allocation2 + $0x30] sm:$0xff] %v2527
    %2576 = vst.msk [vmem:[#allocation2 + $0x38] sm:$0xff] %vm1583, %v2528
    %2577 = vst [vmem:[#allocation2 + $0x40] sm:$0xff] %v2529
    %2578 = vst.msk [vmem:[#allocation2 + $0x48] sm:$0xff] %vm1583, %v2530
    %2579 = vst [vmem:[#allocation2 + $0x50] sm:$0xff] %v2531
    %2580 = vst.msk [vmem:[#allocation2 + $0x58] sm:$0xff] %vm1583, %v2532
    %2581 = vst [vmem:[#allocation2 + $0x60] sm:$0xff] %v2533
    %2582 = vst.msk [vmem:[#allocation2 + $0x68] sm:$0xff] %vm1583, %v2534
    %2583 = vst [vmem:[#allocation2 + $0x70] sm:$0xff] %v2535
    %2584 = vst.msk [vmem:[#allocation2 + $0x78] sm:$0xff] %vm1583, %v2536
    %2585 = vst [vmem:[#allocation2 + $0x80] sm:$0xff] %v2537
    %2586 = vst.msk [vmem:[#allocation2 + $0x88] sm:$0xff] %vm1583, %v2538
    %2587 = vst [vmem:[#allocation2 + $0x90] sm:$0xff] %v2539
    %2588 = vst.msk [vmem:[#allocation2 + $0x98] sm:$0xff] %vm1583, %v2540
    %2589 = vst [vmem:[#allocation2 + $0xa0] sm:$0xff] %v2541
    %2590 = vst.msk [vmem:[#allocation2 + $0xa8] sm:$0xff] %vm1583, %v2542
    %2591 = vst [vmem:[#allocation2 + $0xb0] sm:$0xff] %v2543
    %2592 = vst.msk [vmem:[#allocation2 + $0xb8] sm:$0xff] %vm1583, %v2544
    %2593 = vst [vmem:[#allocation2 + $0xc0] sm:$0xff] %v2545
    %2594 = vst.msk [vmem:[#allocation2 + $0xc8] sm:$0xff] %vm1583, %v2546
    %2595 = vst [vmem:[#allocation2 + $0xd0] sm:$0xff] %v2547
    %2596 = vst.msk [vmem:[#allocation2 + $0xd8] sm:$0xff] %vm1583, %v2548
    %2597 = vst [vmem:[#allocation2 + $0xe0] sm:$0xff] %v2549
    %2598 = vst.msk [vmem:[#allocation2 + $0xe8] sm:$0xff] %vm1583, %v2550
    %2599 = vst [vmem:[#allocation2 + $0xf0] sm:$0xff] %v2551
    %2600 = vst.msk [vmem:[#allocation2 + $0xf8] sm:$0xff] %vm1583, %v2552
    %2601 = vst [vmem:[#allocation2 + $0x100] sm:$0xff] %v2553
    %2602 = vst.msk [vmem:[#allocation2 + $0x108] sm:$0xff] %vm1583, %v2554
    %2603 = vst [vmem:[#allocation2 + $0x110] sm:$0xff] %v2555
    %2604 = vst.msk [vmem:[#allocation2 + $0x118] sm:$0xff] %vm1583, %v2556
    %2605 = vst [vmem:[#allocation2 + $0x120] sm:$0xff] %v2557
    %2606 = vst.msk [vmem:[#allocation2 + $0x128] sm:$0xff] %vm1583, %v2558
    %2607 = vst [vmem:[#allocation2 + $0x130] sm:$0xff] %v2559
    %2608 = vst.msk [vmem:[#allocation2 + $0x138] sm:$0xff] %vm1583, %v2560
    %2609 = vst [vmem:[#allocation2 + $0x140] sm:$0xff] %v2561
    %2610 = vst.msk [vmem:[#allocation2 + $0x148] sm:$0xff] %vm1583, %v2562
    %2611 = vst [vmem:[#allocation2 + $0x150] sm:$0xff] %v2563
    %2612 = vst.msk [vmem:[#allocation2 + $0x158] sm:$0xff] %vm1583, %v2564
    %2613 = vst [vmem:[#allocation2 + $0x160] sm:$0xff] %v2565
    %2614 = vst.msk [vmem:[#allocation2 + $0x168] sm:$0xff] %vm1583, %v2566
    %2615 = vst [vmem:[#allocation2 + $0x170] sm:$0xff] %v2567
    %2616 = vst.msk [vmem:[#allocation2 + $0x178] sm:$0xff] %vm1583, %v2568
    // Predicated region
    $region14: #{tpu_custom_call.1} parent=1 // pred_check
      _
    $region15: #{tpu_custom_call.1} parent=1 // pred_check_branch
      %2618 = sbr.rel (0) target = $region17
    $region16: #{tpu_custom_call.1} parent=1 // pred_region
      %s2620 = ssub.s32 6144, 6144
      %2621 = vsyncadd [#allocation3], %s2620
      %s2622 = sshll.u32 [#allocation2], 4
      %s2623 = int_to_ptr.vmem [resolvable:$true] %s2622
      %2628 = dma.vmem_to_hbm [thread:$0]  %s2623, 6144, %s3, [#allocation3], 256, 256, 16
    $region17: #{tpu_custom_call.1} parent=1 // pred_fallthru
      _
    // Predicated region
    $region18: #{tpu_custom_call.1} parent=1 // pred_check
      _
    $region19: #{tpu_custom_call.1} parent=1 // pred_check_branch
      %2630 = sbr.rel (0) target = $region21
    $region20: #{tpu_custom_call.1} parent=1 // pred_region
      %2631 = dma.done [#allocation3], 6144
    $region21: #{tpu_custom_call.1} parent=1 // pred_fallthru
      _
    %2632 = vsyncpa [#allocation3], 1

</llo_original>
